<compile_context>
chip_gen: v6e
topology: v6e:2x2x1
jax: 0.10.0
libtpu: 0.0.40
codegen_flags: <defaults>
</compile_context>

<pallas_src>
import math
from functools import partial

import jax
import jax.numpy as jnp
from jax.experimental import pallas as pl
from jax.experimental.pallas import tpu as pltpu


def self_attention_kernel(x_ref, bias_ref, wf_ref, woh_ref, bo_ref, o_ref, *,
                          heads, head_dim, lk, lv, lq,
                          matmul_dtype, approx_recip):
    H, D = heads, head_dim
    mdt = matmul_dtype
    ltot = lk + lv + lq

    # Fused projection: one batched MXU contraction produces K, V and the
    # (pre-scaled) Q for every head, already in head-major (H, L, D) layout.
    x = jnp.broadcast_to(x_ref[...][None, :, :], (H, ltot, x_ref.shape[-1]))
    proj = jax.lax.dot_general(
        x, wf_ref[...],
        dimension_numbers=(((2,), (1,)), ((0,), (0,))),
        preferred_element_type=jnp.float32)                 # (H, Ltot, 3D) f32

    k_h = proj[:, :lk, 0:D]                                 # (H, Lk, D)
    v_h = proj[:, lk:lk + lv, D:2 * D]                      # (H, Lv, D)
    q_h = proj[:, lk + lv:, 2 * D:]                         # (H, Lq, D), already * 1/sqrt(E)

    # Head-batched energy (already on the scaled-logit scale).
    energy = jax.lax.dot_general(
        q_h.astype(mdt), k_h.astype(mdt),
        dimension_numbers=(((2,), (2,)), ((0,), (0,))),
        preferred_element_type=jnp.float32)                 # (H, Lq, Lk)

    # Additive mask bias (0 or -1e20/sqrt(E)), shared across heads: one VPU add.
    logits = energy + bias_ref[...]

    # Numerically-stable softmax over keys, kept in f32 on the VPU/EUP.
    m = jnp.max(logits, axis=-1, keepdims=True)
    p = jnp.exp(logits - m)
    l = jnp.sum(p, axis=-1, keepdims=True)
    attn = p * pl.reciprocal(l, approx=approx_recip)        # (H, Lq, Lk)

    # Head-batched attention output.
    ctx = jax.lax.dot_general(
        attn.astype(mdt), v_h.astype(mdt),
        dimension_numbers=(((2,), (1,)), ((0,), (0,))),
        preferred_element_type=jnp.float32)                 # (H, Lq, D)

    # fc_out folded per head: sum_h ctx[h] @ Wo[h*D:(h+1)*D, :] == concat @ Wo.
    out_h = jax.lax.dot_general(
        ctx.astype(mdt), woh_ref[...],
        dimension_numbers=(((2,), (1,)), ((0,), (0,))),
        preferred_element_type=jnp.float32)                 # (H, Lq, E)

    o_ref[...] = jnp.sum(out_h, axis=0) + bo_ref[...]       # (Lq, E)


def self_attention(k, v, q, mask, wk, wv, wq, wo, bo, *, heads,
                   matmul_dtype=jnp.bfloat16, approx_recip=True):
    N, Lq, E = q.shape
    Lk = k.shape[1]
    Lv = v.shape[1]
    D = E // heads
    assert D * heads == E, "embed_size must be divisible by heads"
    assert Lk == Lv, "key and value sequence lengths must match"
    Ltot = Lk + Lv + Lq
    scale = 1.0 / math.sqrt(E)

    def split_heads_in(w):          # (E, E) -> (H, E, D): per-head output columns
        return jnp.transpose(w.reshape(E, heads, D), (1, 0, 2))

    # Fused, head-major QKV weight; 1/sqrt(E) folded into the Q block.
    w_fused = jnp.concatenate(
        [split_heads_in(wk), split_heads_in(wv), split_heads_in(wq * scale)],
        axis=2).astype(matmul_dtype)                           # (H, E, 3D)
    woh = wo.reshape(heads, D, E).astype(matmul_dtype)         # (H, D, E)
    bo_f = bo.astype(jnp.float32)                              # (1, E)

    # Streams concatenated along the sequence axis -> one projection matmul.
    x_all = jnp.concatenate([k, v, q], axis=1).astype(matmul_dtype)   # (N, Ltot, E)

    # Precomputed additive mask bias (already on the scaled-logit scale).
    bias = jnp.where(mask == 0, jnp.float32(-1e20) * scale,
                     jnp.float32(0.0)).astype(jnp.float32)     # (N, Lq, Lk)

    kernel = partial(self_attention_kernel, heads=heads, head_dim=D,
                     lk=Lk, lv=Lv, lq=Lq,
                     matmul_dtype=matmul_dtype, approx_recip=approx_recip)

    return pl.pallas_call(
        kernel,
        out_shape=jax.ShapeDtypeStruct((N, Lq, E), jnp.float32),
        grid_spec=pltpu.PrefetchScalarGridSpec(
            num_scalar_prefetch=0,
            grid=(N,),
            in_specs=[
                pl.BlockSpec((None, Ltot, E), lambda b: (b, 0, 0)),    # [k;v;q]
                pl.BlockSpec((None, Lq, Lk), lambda b: (b, 0, 0)),     # mask bias
                pl.BlockSpec((heads, E, 3 * D), lambda b: (0, 0, 0)),  # fused QKV W
                pl.BlockSpec((heads, D, E), lambda b: (0, 0, 0)),      # fc_out W
                pl.BlockSpec((1, E), lambda b: (0, 0)),                # fc_out bias
            ],
            out_specs=pl.BlockSpec((None, Lq, E), lambda b: (b, 0, 0)),
        ),
        compiler_params=pltpu.CompilerParams(
            dimension_semantics=("parallel",)),
    )(x_all, bias, w_fused, woh, bo_f)


def reference_forward(k, v, q, mask, wk, wv, wq, wo, bo, *, heads,
                      matmul_dtype=jnp.float32):
    """Pure-JAX reference matching the PyTorch module.

    With matmul_dtype=bf16 it mirrors the kernel's operand-only casting
    (accumulation and softmax stay f32)."""
    N, Lq, E = q.shape
    D = E // heads
    f32 = jnp.float32
    c = lambda a: a.astype(matmul_dtype)
    V = jnp.einsum('nle,ed->nld', c(v), c(wv), preferred_element_type=f32)
    K = jnp.einsum('nle,ed->nld', c(k), c(wk), preferred_element_type=f32)
    Q = jnp.einsum('nle,ed->nld', c(q), c(wq), preferred_element_type=f32)
    V = V.reshape(N, -1, heads, D)
    K = K.reshape(N, -1, heads, D)
    Q = Q.reshape(N, Lq, heads, D)
    energy = jnp.einsum('nqhd,nkhd->nhqk', c(Q), c(K), preferred_element_type=f32)
    energy = jnp.where(mask[:, None, :, :] == 0, f32(-1e20), energy)
    attn = jax.nn.softmax(energy / (E ** 0.5), axis=3)
    out = jnp.einsum('nhql,nlhd->nqhd', c(attn), c(V),
                     preferred_element_type=f32).reshape(N, Lq, E)
    return jnp.einsum('nqe,ef->nqf', c(out), c(wo), preferred_element_type=f32) + bo


if __name__ == "__main__":
    # Small shapes consistent with the module: batch=2, seq=8, embed=32, heads=4.
    N, L, E, H = 2, 8, 32, 4

    key = jax.random.PRNGKey(0)
    kk, kv_, kq, km, k1, k2, k3, k4, k5 = jax.random.split(key, 9)

    k_in = jax.random.normal(kk, (N, L, E), dtype=jnp.float32)
    v_in = jax.random.normal(kv_, (N, L, E), dtype=jnp.float32)
    q_in = jax.random.normal(kq, (N, L, E), dtype=jnp.float32)
    mask = (jax.random.uniform(km, (N, L, L)) > 0.2).astype(jnp.float32)

    sc = 1.0 / math.sqrt(E)
    Wk = jax.random.normal(k1, (E, E), dtype=jnp.float32) * sc
    Wv = jax.random.normal(k2, (E, E), dtype=jnp.float32) * sc
    Wq = jax.random.normal(k3, (E, E), dtype=jnp.float32) * sc
    Wo = jax.random.normal(k4, (E, E), dtype=jnp.float32) * sc
    bo = jax.random.normal(k5, (1, E), dtype=jnp.float32) * 0.1

    # Precise path (f32 matmul operands, exact reciprocal): matches the module.
    out_f32 = jax.block_until_ready(
        self_attention(k_in, v_in, q_in, mask, Wk, Wv, Wq, Wo, bo,
                       heads=H, matmul_dtype=jnp.float32, approx_recip=False))
    ref_f32 = reference_forward(k_in, v_in, q_in, mask, Wk, Wv, Wq, Wo, bo, heads=H)
    assert out_f32.shape == (N, L, E)
    assert jnp.allclose(out_f32, ref_f32, rtol=1e-4, atol=1e-4), \
        "f32 kernel mismatch vs reference"

    # Fast path (bf16 MXU operands, f32 softmax, approx EUP reciprocal).
    out_bf16 = jax.block_until_ready(
        self_attention(k_in, v_in, q_in, mask, Wk, Wv, Wq, Wo, bo,
                       heads=H, matmul_dtype=jnp.bfloat16, approx_recip=True))
    ref_bf16 = reference_forward(k_in, v_in, q_in, mask, Wk, Wv, Wq, Wo, bo,
                                 heads=H, matmul_dtype=jnp.bfloat16)
    assert jnp.allclose(out_bf16, ref_bf16, rtol=5e-2, atol=5e-2), \
        "bf16 kernel mismatch vs bf16 reference"

    print("KERNEL_OK")
</pallas_src>

<mosaic_0001>
module attributes {stable_mosaic.version = 11 : i64} {
  func.func @self_attention_kernel(%arg0: i32, %arg1: memref<1x24x32xf32, #tpu.memory_space<vmem>>, %arg2: memref<1x8x8xf32, #tpu.memory_space<vmem>>, %arg3: memref<4x32x24xf32, #tpu.memory_space<vmem>>, %arg4: memref<4x8x32xf32, #tpu.memory_space<vmem>>, %arg5: memref<1x32xf32, #tpu.memory_space<vmem>>, %arg6: memref<1x8x32xf32, #tpu.memory_space<vmem>>) attributes {dimension_semantics = [#tpu.dimension_semantics<parallel>], iteration_bounds = array<i64: 2>, scalar_prefetch = 0 : i64, scratch_operands = 0 : i64, tpu.core_type = #tpu.core_type<tc>, window_params = [{transform_indices = @transform_0, window_bounds = array<i64: 1, 24, 32>}, {transform_indices = @transform_1, window_bounds = array<i64: 1, 8, 8>}, {pipeline_mode = #tpu.pipeline_mode<synchronous>, transform_indices = @transform_2, window_bounds = array<i64: 4, 32, 24>}, {pipeline_mode = #tpu.pipeline_mode<synchronous>, transform_indices = @transform_3, window_bounds = array<i64: 4, 8, 32>}, {pipeline_mode = #tpu.pipeline_mode<synchronous>, transform_indices = @transform_4, window_bounds = array<i64: 1, 32>}, {transform_indices = @transform_5, window_bounds = array<i64: 1, 8, 32>}]} {
    %c0 = arith.constant 0 : index
    %c0_0 = arith.constant 0 : index
    %c0_1 = arith.constant 0 : index
    %0 = vector.load %arg1[%c0, %c0_0, %c0_1] : memref<1x24x32xf32, #tpu.memory_space<vmem>>, vector<1x24x32xf32>
    %1 = vector.shape_cast %0 : vector<1x24x32xf32> to vector<24x32xf32>
    %2 = vector.shape_cast %1 : vector<24x32xf32> to vector<1x24x32xf32>
    %3 = vector.shape_cast %2 : vector<1x24x32xf32> to vector<1x24x32xf32>
    %4 = vector.broadcast %3 : vector<1x24x32xf32> to vector<4x24x32xf32>
    %c0_2 = arith.constant 0 : index
    %c0_3 = arith.constant 0 : index
    %c0_4 = arith.constant 0 : index
    %5 = vector.load %arg3[%c0_2, %c0_3, %c0_4] : memref<4x32x24xf32, #tpu.memory_space<vmem>>, vector<4x32x24xf32>
    %cst = arith.constant dense<0.000000e+00> : vector<4x24x24xf32>
    %6 = tpu.matmul %4, %5, %cst {dimension_numbers = #tpu.dot_dimension_numbers<[2], [1], [1], [2], [0, 0, 0, 1, 1, 2], [0], [0]>} : vector<4x24x32xf32>, vector<4x32x24xf32>, vector<4x24x24xf32> -> vector<4x24x24xf32>
    %7 = vector.extract_strided_slice %6 {offsets = [0, 0, 0], sizes = [4, 8, 8], strides = [1, 1, 1]} : vector<4x24x24xf32> to vector<4x8x8xf32>
    %8 = vector.extract_strided_slice %6 {offsets = [0, 8, 8], sizes = [4, 8, 8], strides = [1, 1, 1]} : vector<4x24x24xf32> to vector<4x8x8xf32>
    %9 = vector.extract_strided_slice %6 {offsets = [0, 16, 16], sizes = [4, 8, 8], strides = [1, 1, 1]} : vector<4x24x24xf32> to vector<4x8x8xf32>
    %cst_5 = arith.constant dense<0.000000e+00> : vector<4x8x8xf32>
    %10 = tpu.matmul %9, %7, %cst_5 {dimension_numbers = #tpu.dot_dimension_numbers<[2], [2], [1], [1], [0, 0, 0, 1, 1, 1], [0], [0]>} : vector<4x8x8xf32>, vector<4x8x8xf32>, vector<4x8x8xf32> -> vector<4x8x8xf32>
    %c0_6 = arith.constant 0 : index
    %c0_7 = arith.constant 0 : index
    %c0_8 = arith.constant 0 : index
    %11 = vector.load %arg2[%c0_6, %c0_7, %c0_8] : memref<1x8x8xf32, #tpu.memory_space<vmem>>, vector<1x8x8xf32>
    %12 = vector.shape_cast %11 : vector<1x8x8xf32> to vector<8x8xf32>
    %13 = vector.shape_cast %12 : vector<8x8xf32> to vector<1x8x8xf32>
    %14 = vector.broadcast %13 : vector<1x8x8xf32> to vector<4x8x8xf32>
    %15 = arith.addf %10, %14 : vector<4x8x8xf32>
    %cst_9 = arith.constant dense<0xFF800000> : vector<4x8xf32>
    %16 = vector.multi_reduction <maximumf>, %15, %cst_9 [2] : vector<4x8x8xf32> to vector<4x8xf32>
    %17 = vector.shape_cast %16 : vector<4x8xf32> to vector<4x8x1xf32>
    %18 = vector.broadcast %17 : vector<4x8x1xf32> to vector<4x8x8xf32>
    %19 = arith.subf %15, %18 : vector<4x8x8xf32>
    %20 = math.exp %19 : vector<4x8x8xf32>
    %cst_10 = arith.constant dense<0.000000e+00> : vector<4x8xf32>
    %21 = vector.multi_reduction <add>, %20, %cst_10 [2] : vector<4x8x8xf32> to vector<4x8xf32>
    %22 = vector.shape_cast %21 : vector<4x8xf32> to vector<4x8x1xf32>
    %23 = tpu.reciprocal %22 : vector<4x8x1xf32> -> vector<4x8x1xf32>
    %24 = vector.broadcast %23 : vector<4x8x1xf32> to vector<4x8x8xf32>
    %25 = arith.mulf %20, %24 : vector<4x8x8xf32>
    %cst_11 = arith.constant dense<0.000000e+00> : vector<4x8x8xf32>
    %26 = tpu.matmul %25, %8, %cst_11 {dimension_numbers = #tpu.dot_dimension_numbers<[2], [1], [1], [2], [0, 0, 0, 1, 1, 2], [0], [0]>} : vector<4x8x8xf32>, vector<4x8x8xf32>, vector<4x8x8xf32> -> vector<4x8x8xf32>
    %c0_12 = arith.constant 0 : index
    %c0_13 = arith.constant 0 : index
    %c0_14 = arith.constant 0 : index
    %27 = vector.load %arg4[%c0_12, %c0_13, %c0_14] : memref<4x8x32xf32, #tpu.memory_space<vmem>>, vector<4x8x32xf32>
    %cst_15 = arith.constant dense<0.000000e+00> : vector<4x8x32xf32>
    %28 = tpu.matmul %26, %27, %cst_15 {dimension_numbers = #tpu.dot_dimension_numbers<[2], [1], [1], [2], [0, 0, 0, 1, 1, 2], [0], [0]>} : vector<4x8x8xf32>, vector<4x8x32xf32>, vector<4x8x32xf32> -> vector<4x8x32xf32>
    %cst_16 = arith.constant dense<0.000000e+00> : vector<8x32xf32>
    %29 = vector.multi_reduction <add>, %28, %cst_16 [0] : vector<4x8x32xf32> to vector<8x32xf32>
    %c0_17 = arith.constant 0 : index
    %c0_18 = arith.constant 0 : index
    %30 = vector.load %arg5[%c0_17, %c0_18] : memref<1x32xf32, #tpu.memory_space<vmem>>, vector<1x32xf32>
    %31 = vector.broadcast %30 : vector<1x32xf32> to vector<8x32xf32>
    %32 = arith.addf %29, %31 : vector<8x32xf32>
    %c0_19 = arith.constant 0 : index
    %c0_20 = arith.constant 0 : index
    %c0_21 = arith.constant 0 : index
    %33 = vector.load %arg6[%c0_19, %c0_20, %c0_21] : memref<1x8x32xf32, #tpu.memory_space<vmem>>, vector<1x8x32xf32>
    %34 = vector.shape_cast %33 : vector<1x8x32xf32> to vector<8x32xf32>
    %35 = vector.shape_cast %32 : vector<8x32xf32> to vector<1x8x32xf32>
    tpu.vector_store %arg6[%c0_19, %c0_20, %c0_21], %35 {strides = array<i32>} : memref<1x8x32xf32, #tpu.memory_space<vmem>>, vector<1x8x32xf32>,
    return
  }
  func.func @transform_0(%arg0: i32) -> (i32, i32, i32) {
    %c0_i32 = arith.constant 0 : i32
    %c0_i32_0 = arith.constant 0 : i32
    %c0_i32_1 = arith.constant 0 : i32
    return %arg0, %c0_i32, %c0_i32_0 : i32, i32, i32
  }
  func.func @transform_1(%arg0: i32) -> (i32, i32, i32) {
    %c0_i32 = arith.constant 0 : i32
    %c0_i32_0 = arith.constant 0 : i32
    %c0_i32_1 = arith.constant 0 : i32
    return %arg0, %c0_i32, %c0_i32_0 : i32, i32, i32
  }
  func.func @transform_2(%arg0: i32) -> (i32, i32, i32) {
    %c0_i32 = arith.constant 0 : i32
    %c0_i32_0 = arith.constant 0 : i32
    %c0_i32_1 = arith.constant 0 : i32
    %c0_i32_2 = arith.constant 0 : i32
    return %c0_i32, %c0_i32_0, %c0_i32_1 : i32, i32, i32
  }
  func.func @transform_3(%arg0: i32) -> (i32, i32, i32) {
    %c0_i32 = arith.constant 0 : i32
    %c0_i32_0 = arith.constant 0 : i32
    %c0_i32_1 = arith.constant 0 : i32
    %c0_i32_2 = arith.constant 0 : i32
    return %c0_i32, %c0_i32_0, %c0_i32_1 : i32, i32, i32
  }
  func.func @transform_4(%arg0: i32) -> (i32, i32) {
    %c0_i32 = arith.constant 0 : i32
    %c0_i32_0 = arith.constant 0 : i32
    %c0_i32_1 = arith.constant 0 : i32
    return %c0_i32, %c0_i32_0 : i32, i32
  }
  func.func @transform_5(%arg0: i32) -> (i32, i32, i32) {
    %c0_i32 = arith.constant 0 : i32
    %c0_i32_0 = arith.constant 0 : i32
    %c0_i32_1 = arith.constant 0 : i32
    return %arg0, %c0_i32, %c0_i32_0 : i32, i32, i32
  }
}

</mosaic_0001>

<llo_original>
// kernel: tpu_custom_call.1
$region0: #{tpu_custom_call.1}
  #allocation0 [shape = 'u32[]', space=smem, size = 0x4, offset = 0x4, fixed_abs, tag = 'smem constant byte address 0x4 - core index']
  #allocation1 [shape = 'u32[144,128]{1,0:T(1,128)}', space=vmem, size = 0x12000, scoped, tag = 'internal scratch']
  %s0 = inlined_call_operand.vmem [shape: f32[2,24,32], index: 0, kind: input, shape index: {}]
  %s1 = inlined_call_operand.vmem [shape: f32[2,8,8], index: 1, kind: input, shape index: {}]
  %s2 = inlined_call_operand.vmem [shape: f32[4,32,24], index: 2, kind: input, shape index: {}]
  %s3 = inlined_call_operand.vmem [shape: f32[4,8,32], index: 3, kind: input, shape index: {}]
  %s4 = inlined_call_operand.vmem [shape: f32[1,32], index: 4, kind: input, shape index: {}]
  %s5 = inlined_call_operand.hbm [shape: f32[2,8,32], index: 5, kind: output, shape index: {}]
  %s6 = sld [smem:[#allocation0]]
  $region53: #{tpu_custom_call.1} parent=0
    _
  %s8 = ssub.s32 1, %s6
  %s9 = scalar_select 0, %s8, %s6
  $region1: #{tpu_custom_call.1} parent=0
    #allocation2 [shape = 'u8[8192]{0}', space=vmem, size = 0x2000, scoped, tag = 'output window, operand 0']
    #allocation3 [shape = 's32[2]{0}', space=sflag, size = 0x8, scoped, tag = 'scoped memory for tpu_custom_call.1']
    %10 = vsyncpa [#allocation3], 0
    %s11 = scalar_lea.sflag [#allocation3], 1
    %12 = vsyncpa %s11, 0
    loop: start=0, step=1, limit=4
    $region2: #{tpu_custom_call.1} parent=1 // loop_pre_header
      _
    $region3: #{tpu_custom_call.1} parent=1 // loop_header
      %s14 = sphi 0, %s18
      %p15 = scmp.ge.s32.totalorder %s14, 4
      %s24 = sphi 0, %s26
      %s27 = sphi 0, %s24
      %s28 = sphi 0, %s27
      %s44 = sphi 0, %s28
      %s50 = sphi 0, %s52
      %s53 = sphi 0, %s50
      %s54 = sphi 0, %s53
      %s70 = sphi 0, %s54
      %s74 = sphi 0, %s74
      %s76 = sphi 0, %s74
      %s77 = sphi 0, %s76
      %s91 = sphi 0, %s77
      %s95 = sphi 0, %s95
      %s97 = sphi 0, %s95
      %s98 = sphi 0, %s97
      %s112 = sphi 0, %s98
      %s116 = sphi 0, %s116
      %s118 = sphi 0, %s116
      %s119 = sphi 0, %s118
      %s133 = sphi 0, %s119
      %s139 = sphi 0, %s141
      %s142 = sphi 0, %s139
      %s143 = sphi 0, %s142
      %s159 = sphi 0, %s143
    $region4: #{tpu_custom_call.1} parent=1 // loop_header_branch
      %17 = sbr.rel (%p15) target = $region8
    $region5: #{tpu_custom_call.1} parent=1 // loop_body
      %s19 = ssub.s32 %s14, 1
      %s20 = ssub.s32 %s14, 2
      %s21 = sadd.s32 %s14, 1
      %s22 = ssub.s32 %s14, %s21
      %p23 = scmp.eq.s32.totalorder %s22, 0
      %s25 = sadd.s32 %s24, 1
      %s26 = scalar_select %p23, %s24, %s25
      %p29 = pneg %p23
      %p30 = scmp.eq.s32.totalorder %s14, 1
      %p31 = por %p29, %p30
      %p32 = scmp.ne.s32.totalorder %s24, %s27
      %p33 = scmp.eq.s32.totalorder %s14, 0
      %p34 = por %p32, %p33
      %p35 = scmp.ne.s32.totalorder %s24, %s27
      %p36 = scmp.eq.s32.totalorder %s19, 1
      %p37 = por %p35, %p36
      %p38 = scmp.ne.s32.totalorder %s27, %s28
      %p39 = scmp.eq.s32.totalorder %s19, 0
      %p40 = por %p38, %p39
      %p41 = scmp.ne.s32.totalorder %s27, %s28
      %p42 = scmp.eq.s32.totalorder %s20, 1
      %p43 = por %p41, %p42
      %p45 = scmp.ne.s32.totalorder %s28, %s44
      %p46 = scmp.eq.s32.totalorder %s20, 0
      %p47 = por %p45, %p46
      %s48 = ssub.s32 %s14, %s21
      %p49 = scmp.eq.s32.totalorder %s48, 0
      %s51 = sadd.s32 %s50, 1
      %s52 = scalar_select %p49, %s50, %s51
      %p55 = pneg %p49
      %p56 = scmp.eq.s32.totalorder %s14, 1
      %p57 = por %p55, %p56
      %p58 = scmp.ne.s32.totalorder %s50, %s53
      %p59 = scmp.eq.s32.totalorder %s14, 0
      %p60 = por %p58, %p59
      %p61 = scmp.ne.s32.totalorder %s50, %s53
      %p62 = scmp.eq.s32.totalorder %s19, 1
      %p63 = por %p61, %p62
      %p64 = scmp.ne.s32.totalorder %s53, %s54
      %p65 = scmp.eq.s32.totalorder %s19, 0
      %p66 = por %p64, %p65
      %p67 = scmp.ne.s32.totalorder %s53, %s54
      %p68 = scmp.eq.s32.totalorder %s20, 1
      %p69 = por %p67, %p68
      %p71 = scmp.ne.s32.totalorder %s54, %s70
      %p72 = scmp.eq.s32.totalorder %s20, 0
      %p73 = por %p71, %p72
      %s75 = sadd.s32 %s74, 1
      %p78 = scmp.eq.s32.totalorder %s14, 1
      %p79 = scmp.ne.s32.totalorder %s74, %s76
      %p80 = scmp.eq.s32.totalorder %s14, 0
      %p81 = por %p79, %p80
      %p82 = scmp.ne.s32.totalorder %s74, %s76
      %p83 = scmp.eq.s32.totalorder %s19, 1
      %p84 = por %p82, %p83
      %p85 = scmp.ne.s32.totalorder %s76, %s77
      %p86 = scmp.eq.s32.totalorder %s19, 0
      %p87 = por %p85, %p86
      %p88 = scmp.ne.s32.totalorder %s76, %s77
      %p89 = scmp.eq.s32.totalorder %s20, 1
      %p90 = por %p88, %p89
      %p92 = scmp.ne.s32.totalorder %s77, %s91
      %p93 = scmp.eq.s32.totalorder %s20, 0
      %p94 = por %p92, %p93
      %s96 = sadd.s32 %s95, 1
      %p99 = scmp.eq.s32.totalorder %s14, 1
      %p100 = scmp.ne.s32.totalorder %s95, %s97
      %p101 = scmp.eq.s32.totalorder %s14, 0
      %p102 = por %p100, %p101
      %p103 = scmp.ne.s32.totalorder %s95, %s97
      %p104 = scmp.eq.s32.totalorder %s19, 1
      %p105 = por %p103, %p104
      %p106 = scmp.ne.s32.totalorder %s97, %s98
      %p107 = scmp.eq.s32.totalorder %s19, 0
      %p108 = por %p106, %p107
      %p109 = scmp.ne.s32.totalorder %s97, %s98
      %p110 = scmp.eq.s32.totalorder %s20, 1
      %p111 = por %p109, %p110
      %p113 = scmp.ne.s32.totalorder %s98, %s112
      %p114 = scmp.eq.s32.totalorder %s20, 0
      %p115 = por %p113, %p114
      %s117 = sadd.s32 %s116, 1
      %p120 = scmp.eq.s32.totalorder %s14, 1
      %p121 = scmp.ne.s32.totalorder %s116, %s118
      %p122 = scmp.eq.s32.totalorder %s14, 0
      %p123 = por %p121, %p122
      %p124 = scmp.ne.s32.totalorder %s116, %s118
      %p125 = scmp.eq.s32.totalorder %s19, 1
      %p126 = por %p124, %p125
      %p127 = scmp.ne.s32.totalorder %s118, %s119
      %p128 = scmp.eq.s32.totalorder %s19, 0
      %p129 = por %p127, %p128
      %p130 = scmp.ne.s32.totalorder %s118, %s119
      %p131 = scmp.eq.s32.totalorder %s20, 1
      %p132 = por %p130, %p131
      %p134 = scmp.ne.s32.totalorder %s119, %s133
      %p135 = scmp.eq.s32.totalorder %s20, 0
      %p136 = por %p134, %p135
      %s137 = ssub.s32 %s14, %s21
      %p138 = scmp.eq.s32.totalorder %s137, 0
      %s140 = sadd.s32 %s139, 1
      %s141 = scalar_select %p138, %s139, %s140
      %p144 = pneg %p138
      %p145 = scmp.eq.s32.totalorder %s14, 1
      %p146 = por %p144, %p145
      %p147 = scmp.ne.s32.totalorder %s139, %s142
      %p148 = scmp.eq.s32.totalorder %s14, 0
      %p149 = por %p147, %p148
      %p150 = scmp.ne.s32.totalorder %s139, %s142
      %p151 = scmp.eq.s32.totalorder %s19, 1
      %p152 = por %p150, %p151
      %p153 = scmp.ne.s32.totalorder %s142, %s143
      %p154 = scmp.eq.s32.totalorder %s19, 0
      %p155 = por %p153, %p154
      %p156 = scmp.ne.s32.totalorder %s142, %s143
      %p157 = scmp.eq.s32.totalorder %s20, 1
      %p158 = por %p156, %p157
      %p160 = scmp.ne.s32.totalorder %s143, %s159
      %p161 = scmp.eq.s32.totalorder %s20, 0
      %p162 = por %p160, %p161
      %p163 = scmp.le.s32.totalorder 1, %s14
      %p164 = scmp.lt.s32.totalorder %s14, 3
      %p165 = pnand %p163, %p164
      %p166 = pneg %p165
      // Predicated region
      $region9: #{tpu_custom_call.1} parent=5 // pred_check
        _
      $region10: #{tpu_custom_call.1} parent=5 // pred_check_branch
        %168 = sbr.rel (%p165) target = $region12
      $region11: #{tpu_custom_call.1} parent=5 // pred_region
        %s169 = ssub.s32 %s14, 1
        // Predicated region
        $region13: #{tpu_custom_call.1} parent=11 // pred_check
          %p170 = pneg %p87
        $region14: #{tpu_custom_call.1} parent=11 // pred_check_branch
          %172 = sbr.rel (%p170) target = $region16
        $region15: #{tpu_custom_call.1} parent=11 // pred_region
          _
        $region16: #{tpu_custom_call.1} parent=11 // pred_fallthru
          _
        // Predicated region
        $region17: #{tpu_custom_call.1} parent=11 // pred_check
          %p173 = pneg %p108
        $region18: #{tpu_custom_call.1} parent=11 // pred_check_branch
          %175 = sbr.rel (%p173) target = $region20
        $region19: #{tpu_custom_call.1} parent=11 // pred_region
          _
        $region20: #{tpu_custom_call.1} parent=11 // pred_fallthru
          _
        // Predicated region
        $region21: #{tpu_custom_call.1} parent=11 // pred_check
          %p176 = pneg %p129
        $region22: #{tpu_custom_call.1} parent=11 // pred_check_branch
          %178 = sbr.rel (%p176) target = $region24
        $region23: #{tpu_custom_call.1} parent=11 // pred_region
          _
        $region24: #{tpu_custom_call.1} parent=11 // pred_fallthru
          _
      $region12: #{tpu_custom_call.1} parent=5 // pred_fallthru
        _
      %p179 = scmp.lt.s32.totalorder %s14, 2
      // Predicated region
      $region25: #{tpu_custom_call.1} parent=5 // pred_check
        %p180 = pneg %p179
      $region26: #{tpu_custom_call.1} parent=5 // pred_check_branch
        %182 = sbr.rel (%p180) target = $region28
      $region27: #{tpu_custom_call.1} parent=5 // pred_region
        // Predicated region
        $region29: #{tpu_custom_call.1} parent=27 // pred_check
          %p183 = pneg %p34
        $region30: #{tpu_custom_call.1} parent=27 // pred_check_branch
          %185 = sbr.rel (%p183) target = $region32
        $region31: #{tpu_custom_call.1} parent=27 // pred_region
          %p186 = scmp.lt.s32.totalorder %s14, 1
          %s187 = scalar_select %p186, %s14, 1
          %s188 = smul.addr %s187, 3
          %s189 = smul.addr %s188, 8
          %s190 = scalar_lea.vmem %s0, %s189
        $region32: #{tpu_custom_call.1} parent=27 // pred_fallthru
          _
        // Predicated region
        $region33: #{tpu_custom_call.1} parent=27 // pred_check
          %p191 = pneg %p60
        $region34: #{tpu_custom_call.1} parent=27 // pred_check_branch
          %193 = sbr.rel (%p191) target = $region36
        $region35: #{tpu_custom_call.1} parent=27 // pred_region
          %p194 = scmp.lt.s32.totalorder %s14, 1
          %s195 = scalar_select %p194, %s14, 1
          %s196 = smul.addr %s195, 8
          %s197 = scalar_lea.vmem %s1, %s196
        $region36: #{tpu_custom_call.1} parent=27 // pred_fallthru
          _
      $region28: #{tpu_custom_call.1} parent=5 // pred_fallthru
        _
      %p198 = scmp.le.s32.totalorder 1, %s14
      %p199 = scmp.lt.s32.totalorder %s14, 3
      %p200 = pnand %p198, %p199
      %p201 = pneg %p200
      // Predicated region
      $region37: #{tpu_custom_call.1} parent=5 // pred_check
        _
      $region38: #{tpu_custom_call.1} parent=5 // pred_check_branch
        %203 = sbr.rel (%p200) target = $region40
      $region39: #{tpu_custom_call.1} parent=5 // pred_region
        %s204 = ssub.s32 %s14, 1
        %p205 = scmp.lt.s32.totalorder %s19, 1
        %s206 = scalar_select %p205, %s19, 1
        %s207 = smul.addr %s206, 3
        %s208 = smul.addr %s207, 8
        %s209 = scalar_lea.vmem %s0, %s208
        %p210 = pneg %p40
        %p211 = pneg %p37
        %p212 = scmp.lt.s32.totalorder %s19, 1
        %s213 = scalar_select %p212, %s19, 1
        %s214 = smul.addr %s213, 8
        %s215 = scalar_lea.vmem %s1, %s214
        %p216 = pneg %p66
        %p217 = pneg %p63
        %p218 = pneg %p87
        %p219 = pneg %p84
        %p220 = pneg %p108
        %p221 = pneg %p105
        %p222 = pneg %p129
        %p223 = pneg %p126
        %p224 = pneg %p155
        %p225 = pneg %p152
        %s226 = sand.u32 %s142, 1
        %s227 = scalar_lea.sflag [#allocation3], %s226
        %s228 = sand.u32 %s142, 1
        %s229 = smul.addr %s228, 8
        %s230 = scalar_lea.vmem [#allocation2], %s229
        %p231 = scmp.lt.s32.totalorder %s19, 1
        %s232 = scalar_select %p231, %s19, 1
        %s233 = smul.addr %s232, 3
        %s234 = smul.addr %s233, 8
        %s235 = scalar_lea.vmem %s0, %s234
        %p236 = scmp.lt.s32.totalorder %s19, 1
        %s237 = scalar_select %p236, %s19, 1
        %s238 = smul.addr %s237, 8
        %s239 = scalar_lea.vmem %s1, %s238
        %v240 = vld [vmem:[%s235] sm:$0xff]
        %v241 = vld [vmem:[%s235 + $0x8] sm:$0xff]
        %v242 = vld [vmem:[%s235 + $0x10] sm:$0xff]
        %v243 = vld [vmem:[%s2] sm:$0xff]
        %v244 = vld [vmem:[%s2 + $0x8] sm:$0xff]
        %v245 = vld [vmem:[%s2 + $0x10] sm:$0xff]
        %v246 = vld [vmem:[%s2 + $0x18] sm:$0xff]
        %v247 = vld [vmem:[%s2 + $0x20] sm:$0xff]
        %v248 = vld [vmem:[%s2 + $0x28] sm:$0xff]
        %v249 = vld [vmem:[%s2 + $0x30] sm:$0xff]
        %v250 = vld [vmem:[%s2 + $0x38] sm:$0xff]
        %v251 = vld [vmem:[%s2 + $0x40] sm:$0xff]
        %v252 = vld [vmem:[%s2 + $0x48] sm:$0xff]
        %v253 = vld [vmem:[%s2 + $0x50] sm:$0xff]
        %v254 = vld [vmem:[%s2 + $0x58] sm:$0xff]
        %v255 = vld [vmem:[%s2 + $0x60] sm:$0xff]
        %v256 = vld [vmem:[%s2 + $0x68] sm:$0xff]
        %v257 = vld [vmem:[%s2 + $0x70] sm:$0xff]
        %v258 = vld [vmem:[%s2 + $0x78] sm:$0xff]
        %vm259 = vcmask 261120
        %v261 = vsel %vm259, %v240, 0
        %v264 = vsel %vm259, %v241, 0
        %v267 = vsel %vm259, %v242, 0
        %269 = vmatprep.subr.mxu0 0.0
        %270 = vmatpush1.msra.mxu0 0.0
        %271 = vmatprep.subr.mxu0 0.0
        %272 = vmatpush1.msra.mxu0 0.0
        %273 = vmatprep.subr.mxu0 0.0
        %274 = vmatpush1.msra.mxu0 0.0
        %275 = vmatprep.subr.mxu0 0.0
        %276 = vmatpush1.msra.mxu0 0.0
        %277 = vmatprep.subr.mxu0 0.0
        %278 = vmatpush1.msra.mxu0 0.0
        %279 = vmatprep.subr.mxu0 0.0
        %280 = vmatpush1.msra.mxu0 0.0
        %281 = vmatprep.subr.mxu0 0.0
        %282 = vmatpush1.msra.mxu0 0.0
        %283 = vmatprep.subr.mxu0 0.0
        %284 = vmatpush1.msra.mxu0 0.0
        %285 = vmatprep.subr.mxu0 0.0
        %286 = vmatpush1.msra.mxu0 0.0
        %287 = vmatprep.subr.mxu0 0.0
        %288 = vmatpush1.msra.mxu0 0.0
        %289 = vmatprep.subr.mxu0 0.0
        %290 = vmatpush1.msra.mxu0 0.0
        %291 = vmatprep.subr.mxu0 0.0
        %292 = vmatpush1.msra.mxu0 0.0
        %293 = vmatprep.subr.mxu0 0.0
        %294 = vmatpush1.msra.mxu0 %v246
        %295 = vmatprep.subr.mxu0 0.0
        %296 = vmatpush1.msra.mxu0 %v245
        %297 = vmatprep.subr.mxu0 0.0
        %298 = vmatpush1.msra.mxu0 %v244
        %299 = vmatprep.subr.mxu0 0.0
        %300 = vmatpush1.msra.mxu0 %v243
        %301 = vmatprep.subr.mxu0 0.0
        %302 = vmatpush2.msra.mxu0 0.0
        %303 = vmatprep.subr.mxu0 0.0
        %304 = vmatpush2.msra.mxu0 0.0
        %305 = vmatprep.subr.mxu0 0.0
        %306 = vmatpush2.msra.mxu0 0.0
        %307 = vmatprep.subr.mxu0 0.0
        %308 = vmatpush2.msra.mxu0 0.0
        %309 = vmatprep.subr.mxu0 0.0
        %310 = vmatpush2.msra.mxu0 0.0
        %311 = vmatprep.subr.mxu0 0.0
        %312 = vmatpush2.msra.mxu0 0.0
        %313 = vmatprep.subr.mxu0 0.0
        %314 = vmatpush2.msra.mxu0 0.0
        %315 = vmatprep.subr.mxu0 0.0
        %316 = vmatpush2.msra.mxu0 0.0
        %317 = vmatprep.subr.mxu0 0.0
        %318 = vmatpush2.msra.mxu0 0.0
        %319 = vmatprep.subr.mxu0 0.0
        %320 = vmatpush2.msra.mxu0 0.0
        %321 = vmatprep.subr.mxu0 0.0
        %322 = vmatpush2.msra.mxu0 0.0
        %323 = vmatprep.subr.mxu0 0.0
        %324 = vmatpush2.msra.mxu0 0.0
        %325 = vmatprep.subr.mxu0 0.0
        %326 = vmatpush2.msra.mxu0 0.0
        %327 = vmatprep.subr.mxu0 0.0
        %328 = vmatpush2.msra.mxu0 0.0
        %329 = vmatprep.subr.mxu0 0.0
        %330 = vmatpush2.msra.mxu0 0.0
        %331 = vmatprep.subr.mxu0 0.0
        %332 = vmatpush2.msra.mxu0 0.0
        %333 = vmatprep.mubr.f32.mxu0 0.0
        %334 = vmatmul.mubr.f32.gmra.mxu0 %v261
        %v335 = vpop.f32.mrf.mxu0
        %v336 = vadd.f32 0.0, %v335
        %v337 = vpop.f32.mrf.mxu0
        %338 = vmatprep.mubr.f32.mxu0 0.0
        %339 = vmatmul.mubr.f32.gmra.mxu0 %v264
        %v340 = vpop.f32.mrf.mxu0
        %v341 = vadd.f32 0.0, %v340
        %v342 = vpop.f32.mrf.mxu0
        %343 = vmatprep.mubr.f32.mxu0 0.0
        %344 = vmatmul.mubr.f32.gmra.mxu0 %v267
        %v345 = vpop.f32.mrf.mxu0
        %v346 = vadd.f32 0.0, %v345
        %v347 = vpop.f32.mrf.mxu0
        %348 = vdwg.mxu0
        %349 = vmatprep.subr.mxu0 0.0
        %350 = vmatpush1.msra.mxu0 0.0
        %351 = vmatprep.subr.mxu0 0.0
        %352 = vmatpush1.msra.mxu0 0.0
        %353 = vmatprep.subr.mxu0 0.0
        %354 = vmatpush1.msra.mxu0 0.0
        %355 = vmatprep.subr.mxu0 0.0
        %356 = vmatpush1.msra.mxu0 0.0
        %357 = vmatprep.subr.mxu0 0.0
        %358 = vmatpush1.msra.mxu0 0.0
        %359 = vmatprep.subr.mxu0 0.0
        %360 = vmatpush1.msra.mxu0 0.0
        %361 = vmatprep.subr.mxu0 0.0
        %362 = vmatpush1.msra.mxu0 0.0
        %363 = vmatprep.subr.mxu0 0.0
        %364 = vmatpush1.msra.mxu0 0.0
        %365 = vmatprep.subr.mxu0 0.0
        %366 = vmatpush1.msra.mxu0 0.0
        %367 = vmatprep.subr.mxu0 0.0
        %368 = vmatpush1.msra.mxu0 0.0
        %369 = vmatprep.subr.mxu0 0.0
        %370 = vmatpush1.msra.mxu0 0.0
        %371 = vmatprep.subr.mxu0 0.0
        %372 = vmatpush1.msra.mxu0 0.0
        %373 = vmatprep.subr.mxu0 0.0
        %374 = vmatpush1.msra.mxu0 %v250
        %375 = vmatprep.subr.mxu0 0.0
        %376 = vmatpush1.msra.mxu0 %v249
        %377 = vmatprep.subr.mxu0 0.0
        %378 = vmatpush1.msra.mxu0 %v248
        %379 = vmatprep.subr.mxu0 0.0
        %380 = vmatpush1.msra.mxu0 %v247
        %381 = vmatprep.subr.mxu0 0.0
        %382 = vmatpush2.msra.mxu0 0.0
        %383 = vmatprep.subr.mxu0 0.0
        %384 = vmatpush2.msra.mxu0 0.0
        %385 = vmatprep.subr.mxu0 0.0
        %386 = vmatpush2.msra.mxu0 0.0
        %387 = vmatprep.subr.mxu0 0.0
        %388 = vmatpush2.msra.mxu0 0.0
        %389 = vmatprep.subr.mxu0 0.0
        %390 = vmatpush2.msra.mxu0 0.0
        %391 = vmatprep.subr.mxu0 0.0
        %392 = vmatpush2.msra.mxu0 0.0
        %393 = vmatprep.subr.mxu0 0.0
        %394 = vmatpush2.msra.mxu0 0.0
        %395 = vmatprep.subr.mxu0 0.0
        %396 = vmatpush2.msra.mxu0 0.0
        %397 = vmatprep.subr.mxu0 0.0
        %398 = vmatpush2.msra.mxu0 0.0
        %399 = vmatprep.subr.mxu0 0.0
        %400 = vmatpush2.msra.mxu0 0.0
        %401 = vmatprep.subr.mxu0 0.0
        %402 = vmatpush2.msra.mxu0 0.0
        %403 = vmatprep.subr.mxu0 0.0
        %404 = vmatpush2.msra.mxu0 0.0
        %405 = vmatprep.subr.mxu0 0.0
        %406 = vmatpush2.msra.mxu0 0.0
        %407 = vmatprep.subr.mxu0 0.0
        %408 = vmatpush2.msra.mxu0 0.0
        %409 = vmatprep.subr.mxu0 0.0
        %410 = vmatpush2.msra.mxu0 0.0
        %411 = vmatprep.subr.mxu0 0.0
        %412 = vmatpush2.msra.mxu0 0.0
        %413 = vmatprep.mubr.f32.mxu0 0.0
        %414 = vmatmul.mubr.f32.gmra.mxu0 %v261
        %v415 = vpop.f32.mrf.mxu0
        %v416 = vadd.f32 0.0, %v415
        %v417 = vpop.f32.mrf.mxu0
        %418 = vmatprep.mubr.f32.mxu0 0.0
        %419 = vmatmul.mubr.f32.gmra.mxu0 %v264
        %v420 = vpop.f32.mrf.mxu0
        %v421 = vadd.f32 0.0, %v420
        %v422 = vpop.f32.mrf.mxu0
        %423 = vmatprep.mubr.f32.mxu0 0.0
        %424 = vmatmul.mubr.f32.gmra.mxu0 %v267
        %v425 = vpop.f32.mrf.mxu0
        %v426 = vadd.f32 0.0, %v425
        %v427 = vpop.f32.mrf.mxu0
        %428 = vdwg.mxu0
        %429 = vmatprep.subr.mxu0 0.0
        %430 = vmatpush1.msra.mxu0 0.0
        %431 = vmatprep.subr.mxu0 0.0
        %432 = vmatpush1.msra.mxu0 0.0
        %433 = vmatprep.subr.mxu0 0.0
        %434 = vmatpush1.msra.mxu0 0.0
        %435 = vmatprep.subr.mxu0 0.0
        %436 = vmatpush1.msra.mxu0 0.0
        %437 = vmatprep.subr.mxu0 0.0
        %438 = vmatpush1.msra.mxu0 0.0
        %439 = vmatprep.subr.mxu0 0.0
        %440 = vmatpush1.msra.mxu0 0.0
        %441 = vmatprep.subr.mxu0 0.0
        %442 = vmatpush1.msra.mxu0 0.0
        %443 = vmatprep.subr.mxu0 0.0
        %444 = vmatpush1.msra.mxu0 0.0
        %445 = vmatprep.subr.mxu0 0.0
        %446 = vmatpush1.msra.mxu0 0.0
        %447 = vmatprep.subr.mxu0 0.0
        %448 = vmatpush1.msra.mxu0 0.0
        %449 = vmatprep.subr.mxu0 0.0
        %450 = vmatpush1.msra.mxu0 0.0
        %451 = vmatprep.subr.mxu0 0.0
        %452 = vmatpush1.msra.mxu0 0.0
        %453 = vmatprep.subr.mxu0 0.0
        %454 = vmatpush1.msra.mxu0 %v254
        %455 = vmatprep.subr.mxu0 0.0
        %456 = vmatpush1.msra.mxu0 %v253
        %457 = vmatprep.subr.mxu0 0.0
        %458 = vmatpush1.msra.mxu0 %v252
        %459 = vmatprep.subr.mxu0 0.0
        %460 = vmatpush1.msra.mxu0 %v251
        %461 = vmatprep.subr.mxu0 0.0
        %462 = vmatpush2.msra.mxu0 0.0
        %463 = vmatprep.subr.mxu0 0.0
        %464 = vmatpush2.msra.mxu0 0.0
        %465 = vmatprep.subr.mxu0 0.0
        %466 = vmatpush2.msra.mxu0 0.0
        %467 = vmatprep.subr.mxu0 0.0
        %468 = vmatpush2.msra.mxu0 0.0
        %469 = vmatprep.subr.mxu0 0.0
        %470 = vmatpush2.msra.mxu0 0.0
        %471 = vmatprep.subr.mxu0 0.0
        %472 = vmatpush2.msra.mxu0 0.0
        %473 = vmatprep.subr.mxu0 0.0
        %474 = vmatpush2.msra.mxu0 0.0
        %475 = vmatprep.subr.mxu0 0.0
        %476 = vmatpush2.msra.mxu0 0.0
        %477 = vmatprep.subr.mxu0 0.0
        %478 = vmatpush2.msra.mxu0 0.0
        %479 = vmatprep.subr.mxu0 0.0
        %480 = vmatpush2.msra.mxu0 0.0
        %481 = vmatprep.subr.mxu0 0.0
        %482 = vmatpush2.msra.mxu0 0.0
        %483 = vmatprep.subr.mxu0 0.0
        %484 = vmatpush2.msra.mxu0 0.0
        %485 = vmatprep.subr.mxu0 0.0
        %486 = vmatpush2.msra.mxu0 0.0
        %487 = vmatprep.subr.mxu0 0.0
        %488 = vmatpush2.msra.mxu0 0.0
        %489 = vmatprep.subr.mxu0 0.0
        %490 = vmatpush2.msra.mxu0 0.0
        %491 = vmatprep.subr.mxu0 0.0
        %492 = vmatpush2.msra.mxu0 0.0
        %493 = vmatprep.mubr.f32.mxu0 0.0
        %494 = vmatmul.mubr.f32.gmra.mxu0 %v261
        %v495 = vpop.f32.mrf.mxu0
        %v496 = vadd.f32 0.0, %v495
        %v497 = vpop.f32.mrf.mxu0
        %498 = vmatprep.mubr.f32.mxu0 0.0
        %499 = vmatmul.mubr.f32.gmra.mxu0 %v264
        %v500 = vpop.f32.mrf.mxu0
        %v501 = vadd.f32 0.0, %v500
        %v502 = vpop.f32.mrf.mxu0
        %503 = vmatprep.mubr.f32.mxu0 0.0
        %504 = vmatmul.mubr.f32.gmra.mxu0 %v267
        %v505 = vpop.f32.mrf.mxu0
        %v506 = vadd.f32 0.0, %v505
        %v507 = vpop.f32.mrf.mxu0
        %508 = vdwg.mxu0
        %509 = vmatprep.subr.mxu0 0.0
        %510 = vmatpush1.msra.mxu0 0.0
        %511 = vmatprep.subr.mxu0 0.0
        %512 = vmatpush1.msra.mxu0 0.0
        %513 = vmatprep.subr.mxu0 0.0
        %514 = vmatpush1.msra.mxu0 0.0
        %515 = vmatprep.subr.mxu0 0.0
        %516 = vmatpush1.msra.mxu0 0.0
        %517 = vmatprep.subr.mxu0 0.0
        %518 = vmatpush1.msra.mxu0 0.0
        %519 = vmatprep.subr.mxu0 0.0
        %520 = vmatpush1.msra.mxu0 0.0
        %521 = vmatprep.subr.mxu0 0.0
        %522 = vmatpush1.msra.mxu0 0.0
        %523 = vmatprep.subr.mxu0 0.0
        %524 = vmatpush1.msra.mxu0 0.0
        %525 = vmatprep.subr.mxu0 0.0
        %526 = vmatpush1.msra.mxu0 0.0
        %527 = vmatprep.subr.mxu0 0.0
        %528 = vmatpush1.msra.mxu0 0.0
        %529 = vmatprep.subr.mxu0 0.0
        %530 = vmatpush1.msra.mxu0 0.0
        %531 = vmatprep.subr.mxu0 0.0
        %532 = vmatpush1.msra.mxu0 0.0
        %533 = vmatprep.subr.mxu0 0.0
        %534 = vmatpush1.msra.mxu0 %v258
        %535 = vmatprep.subr.mxu0 0.0
        %536 = vmatpush1.msra.mxu0 %v257
        %537 = vmatprep.subr.mxu0 0.0
        %538 = vmatpush1.msra.mxu0 %v256
        %539 = vmatprep.subr.mxu0 0.0
        %540 = vmatpush1.msra.mxu0 %v255
        %541 = vmatprep.subr.mxu0 0.0
        %542 = vmatpush2.msra.mxu0 0.0
        %543 = vmatprep.subr.mxu0 0.0
        %544 = vmatpush2.msra.mxu0 0.0
        %545 = vmatprep.subr.mxu0 0.0
        %546 = vmatpush2.msra.mxu0 0.0
        %547 = vmatprep.subr.mxu0 0.0
        %548 = vmatpush2.msra.mxu0 0.0
        %549 = vmatprep.subr.mxu0 0.0
        %550 = vmatpush2.msra.mxu0 0.0
        %551 = vmatprep.subr.mxu0 0.0
        %552 = vmatpush2.msra.mxu0 0.0
        %553 = vmatprep.subr.mxu0 0.0
        %554 = vmatpush2.msra.mxu0 0.0
        %555 = vmatprep.subr.mxu0 0.0
        %556 = vmatpush2.msra.mxu0 0.0
        %557 = vmatprep.subr.mxu0 0.0
        %558 = vmatpush2.msra.mxu0 0.0
        %559 = vmatprep.subr.mxu0 0.0
        %560 = vmatpush2.msra.mxu0 0.0
        %561 = vmatprep.subr.mxu0 0.0
        %562 = vmatpush2.msra.mxu0 0.0
        %563 = vmatprep.subr.mxu0 0.0
        %564 = vmatpush2.msra.mxu0 0.0
        %565 = vmatprep.subr.mxu0 0.0
        %566 = vmatpush2.msra.mxu0 0.0
        %567 = vmatprep.subr.mxu0 0.0
        %568 = vmatpush2.msra.mxu0 0.0
        %569 = vmatprep.subr.mxu0 0.0
        %570 = vmatpush2.msra.mxu0 0.0
        %571 = vmatprep.subr.mxu0 0.0
        %572 = vmatpush2.msra.mxu0 0.0
        %573 = vmatprep.mubr.f32.mxu0 0.0
        %574 = vmatmul.mubr.f32.gmra.mxu0 %v261
        %v575 = vpop.f32.mrf.mxu0
        %v576 = vadd.f32 0.0, %v575
        %v577 = vpop.f32.mrf.mxu0
        %578 = vmatprep.mubr.f32.mxu0 0.0
        %579 = vmatmul.mubr.f32.gmra.mxu0 %v264
        %v580 = vpop.f32.mrf.mxu0
        %v581 = vadd.f32 0.0, %v580
        %v582 = vpop.f32.mrf.mxu0
        %583 = vmatprep.mubr.f32.mxu0 0.0
        %584 = vmatmul.mubr.f32.gmra.mxu0 %v267
        %v585 = vpop.f32.mrf.mxu0
        %v586 = vadd.f32 0.0, %v585
        %v587 = vpop.f32.mrf.mxu0
        %588 = vdwg.mxu0
        %v589 = vld [vmem:[%s239] sm:$0xff]
        %591 = vrot.lane.b32.xlu0 %v346, 112
        %v592 = vpop.permute.xlu0 %591
        %vm593 = vcmask 64512
        %v594 = vsel %vm593, %v592, 0
        %v597 = vsel %vm593, %v336, 0
        %599 = vmatprep.subr.mxu0 0.0
        %600 = vmatpush1.xpose.msra.mxu0 0.0
        %601 = vmatprep.subr.mxu0 0.0
        %602 = vmatpush1.xpose.msra.mxu0 0.0
        %603 = vmatprep.subr.mxu0 0.0
        %604 = vmatpush1.xpose.msra.mxu0 0.0
        %605 = vmatprep.subr.mxu0 0.0
        %606 = vmatpush1.xpose.msra.mxu0 0.0
        %607 = vmatprep.subr.mxu0 0.0
        %608 = vmatpush1.xpose.msra.mxu0 0.0
        %609 = vmatprep.subr.mxu0 0.0
        %610 = vmatpush1.xpose.msra.mxu0 0.0
        %611 = vmatprep.subr.mxu0 0.0
        %612 = vmatpush1.xpose.msra.mxu0 0.0
        %613 = vmatprep.subr.mxu0 0.0
        %614 = vmatpush1.xpose.msra.mxu0 0.0
        %615 = vmatprep.subr.mxu0 0.0
        %616 = vmatpush1.xpose.msra.mxu0 0.0
        %617 = vmatprep.subr.mxu0 0.0
        %618 = vmatpush1.xpose.msra.mxu0 0.0
        %619 = vmatprep.subr.mxu0 0.0
        %620 = vmatpush1.xpose.msra.mxu0 0.0
        %621 = vmatprep.subr.mxu0 0.0
        %622 = vmatpush1.xpose.msra.mxu0 0.0
        %623 = vmatprep.subr.mxu0 0.0
        %624 = vmatpush1.xpose.msra.mxu0 0.0
        %625 = vmatprep.subr.mxu0 0.0
        %626 = vmatpush1.xpose.msra.mxu0 0.0
        %627 = vmatprep.subr.mxu0 0.0
        %628 = vmatpush1.xpose.msra.mxu0 0.0
        %629 = vmatprep.subr.mxu0 0.0
        %630 = vmatpush1.xpose.msra.mxu0 %v597
        %631 = vmatprep.subr.mxu0 0.0
        %632 = vmatpush2.xpose.msra.mxu0 0.0
        %633 = vmatprep.subr.mxu0 0.0
        %634 = vmatpush2.xpose.msra.mxu0 0.0
        %635 = vmatprep.subr.mxu0 0.0
        %636 = vmatpush2.xpose.msra.mxu0 0.0
        %637 = vmatprep.subr.mxu0 0.0
        %638 = vmatpush2.xpose.msra.mxu0 0.0
        %639 = vmatprep.subr.mxu0 0.0
        %640 = vmatpush2.xpose.msra.mxu0 0.0
        %641 = vmatprep.subr.mxu0 0.0
        %642 = vmatpush2.xpose.msra.mxu0 0.0
        %643 = vmatprep.subr.mxu0 0.0
        %644 = vmatpush2.xpose.msra.mxu0 0.0
        %645 = vmatprep.subr.mxu0 0.0
        %646 = vmatpush2.xpose.msra.mxu0 0.0
        %647 = vmatprep.subr.mxu0 0.0
        %648 = vmatpush2.xpose.msra.mxu0 0.0
        %649 = vmatprep.subr.mxu0 0.0
        %650 = vmatpush2.xpose.msra.mxu0 0.0
        %651 = vmatprep.subr.mxu0 0.0
        %652 = vmatpush2.xpose.msra.mxu0 0.0
        %653 = vmatprep.subr.mxu0 0.0
        %654 = vmatpush2.xpose.msra.mxu0 0.0
        %655 = vmatprep.subr.mxu0 0.0
        %656 = vmatpush2.xpose.msra.mxu0 0.0
        %657 = vmatprep.subr.mxu0 0.0
        %658 = vmatpush2.xpose.msra.mxu0 0.0
        %659 = vmatprep.subr.mxu0 0.0
        %660 = vmatpush2.xpose.msra.mxu0 0.0
        %661 = vmatprep.subr.mxu0 0.0
        %662 = vmatpush2.xpose.msra.mxu0 0.0
        %663 = vmatprep.mubr.f32.mxu0 0.0
        %664 = vmatmul.mubr.f32.gmra.mxu0 %v594
        %v665 = vpop.f32.mrf.mxu0
        %v666 = vadd.f32 %v589, %v665
        %v667 = vpop.f32.mrf.mxu0
        %668 = vdwg.mxu0
        %670 = vrot.lane.b32.xlu0 %v426, 112
        %v671 = vpop.permute.xlu0 %670
        %v672 = vsel %vm593, %v671, 0
        %v675 = vsel %vm593, %v416, 0
        %677 = vmatprep.subr.mxu0 0.0
        %678 = vmatpush1.xpose.msra.mxu0 0.0
        %679 = vmatprep.subr.mxu0 0.0
        %680 = vmatpush1.xpose.msra.mxu0 0.0
        %681 = vmatprep.subr.mxu0 0.0
        %682 = vmatpush1.xpose.msra.mxu0 0.0
        %683 = vmatprep.subr.mxu0 0.0
        %684 = vmatpush1.xpose.msra.mxu0 0.0
        %685 = vmatprep.subr.mxu0 0.0
        %686 = vmatpush1.xpose.msra.mxu0 0.0
        %687 = vmatprep.subr.mxu0 0.0
        %688 = vmatpush1.xpose.msra.mxu0 0.0
        %689 = vmatprep.subr.mxu0 0.0
        %690 = vmatpush1.xpose.msra.mxu0 0.0
        %691 = vmatprep.subr.mxu0 0.0
        %692 = vmatpush1.xpose.msra.mxu0 0.0
        %693 = vmatprep.subr.mxu0 0.0
        %694 = vmatpush1.xpose.msra.mxu0 0.0
        %695 = vmatprep.subr.mxu0 0.0
        %696 = vmatpush1.xpose.msra.mxu0 0.0
        %697 = vmatprep.subr.mxu0 0.0
        %698 = vmatpush1.xpose.msra.mxu0 0.0
        %699 = vmatprep.subr.mxu0 0.0
        %700 = vmatpush1.xpose.msra.mxu0 0.0
        %701 = vmatprep.subr.mxu0 0.0
        %702 = vmatpush1.xpose.msra.mxu0 0.0
        %703 = vmatprep.subr.mxu0 0.0
        %704 = vmatpush1.xpose.msra.mxu0 0.0
        %705 = vmatprep.subr.mxu0 0.0
        %706 = vmatpush1.xpose.msra.mxu0 0.0
        %707 = vmatprep.subr.mxu0 0.0
        %708 = vmatpush1.xpose.msra.mxu0 %v675
        %709 = vmatprep.subr.mxu0 0.0
        %710 = vmatpush2.xpose.msra.mxu0 0.0
        %711 = vmatprep.subr.mxu0 0.0
        %712 = vmatpush2.xpose.msra.mxu0 0.0
        %713 = vmatprep.subr.mxu0 0.0
        %714 = vmatpush2.xpose.msra.mxu0 0.0
        %715 = vmatprep.subr.mxu0 0.0
        %716 = vmatpush2.xpose.msra.mxu0 0.0
        %717 = vmatprep.subr.mxu0 0.0
        %718 = vmatpush2.xpose.msra.mxu0 0.0
        %719 = vmatprep.subr.mxu0 0.0
        %720 = vmatpush2.xpose.msra.mxu0 0.0
        %721 = vmatprep.subr.mxu0 0.0
        %722 = vmatpush2.xpose.msra.mxu0 0.0
        %723 = vmatprep.subr.mxu0 0.0
        %724 = vmatpush2.xpose.msra.mxu0 0.0
        %725 = vmatprep.subr.mxu0 0.0
        %726 = vmatpush2.xpose.msra.mxu0 0.0
        %727 = vmatprep.subr.mxu0 0.0
        %728 = vmatpush2.xpose.msra.mxu0 0.0
        %729 = vmatprep.subr.mxu0 0.0
        %730 = vmatpush2.xpose.msra.mxu0 0.0
        %731 = vmatprep.subr.mxu0 0.0
        %732 = vmatpush2.xpose.msra.mxu0 0.0
        %733 = vmatprep.subr.mxu0 0.0
        %734 = vmatpush2.xpose.msra.mxu0 0.0
        %735 = vmatprep.subr.mxu0 0.0
        %736 = vmatpush2.xpose.msra.mxu0 0.0
        %737 = vmatprep.subr.mxu0 0.0
        %738 = vmatpush2.xpose.msra.mxu0 0.0
        %739 = vmatprep.subr.mxu0 0.0
        %740 = vmatpush2.xpose.msra.mxu0 0.0
        %741 = vmatprep.mubr.f32.mxu0 0.0
        %742 = vmatmul.mubr.f32.gmra.mxu0 %v672
        %v743 = vpop.f32.mrf.mxu0
        %v744 = vadd.f32 %v589, %v743
        %v745 = vpop.f32.mrf.mxu0
        %746 = vdwg.mxu0
        %748 = vrot.lane.b32.xlu0 %v506, 112
        %v749 = vpop.permute.xlu0 %748
        %v750 = vsel %vm593, %v749, 0
        %v753 = vsel %vm593, %v496, 0
        %755 = vmatprep.subr.mxu0 0.0
        %756 = vmatpush1.xpose.msra.mxu0 0.0
        %757 = vmatprep.subr.mxu0 0.0
        %758 = vmatpush1.xpose.msra.mxu0 0.0
        %759 = vmatprep.subr.mxu0 0.0
        %760 = vmatpush1.xpose.msra.mxu0 0.0
        %761 = vmatprep.subr.mxu0 0.0
        %762 = vmatpush1.xpose.msra.mxu0 0.0
        %763 = vmatprep.subr.mxu0 0.0
        %764 = vmatpush1.xpose.msra.mxu0 0.0
        %765 = vmatprep.subr.mxu0 0.0
        %766 = vmatpush1.xpose.msra.mxu0 0.0
        %767 = vmatprep.subr.mxu0 0.0
        %768 = vmatpush1.xpose.msra.mxu0 0.0
        %769 = vmatprep.subr.mxu0 0.0
        %770 = vmatpush1.xpose.msra.mxu0 0.0
        %771 = vmatprep.subr.mxu0 0.0
        %772 = vmatpush1.xpose.msra.mxu0 0.0
        %773 = vmatprep.subr.mxu0 0.0
        %774 = vmatpush1.xpose.msra.mxu0 0.0
        %775 = vmatprep.subr.mxu0 0.0
        %776 = vmatpush1.xpose.msra.mxu0 0.0
        %777 = vmatprep.subr.mxu0 0.0
        %778 = vmatpush1.xpose.msra.mxu0 0.0
        %779 = vmatprep.subr.mxu0 0.0
        %780 = vmatpush1.xpose.msra.mxu0 0.0
        %781 = vmatprep.subr.mxu0 0.0
        %782 = vmatpush1.xpose.msra.mxu0 0.0
        %783 = vmatprep.subr.mxu0 0.0
        %784 = vmatpush1.xpose.msra.mxu0 0.0
        %785 = vmatprep.subr.mxu0 0.0
        %786 = vmatpush1.xpose.msra.mxu0 %v753
        %787 = vmatprep.subr.mxu0 0.0
        %788 = vmatpush2.xpose.msra.mxu0 0.0
        %789 = vmatprep.subr.mxu0 0.0
        %790 = vmatpush2.xpose.msra.mxu0 0.0
        %791 = vmatprep.subr.mxu0 0.0
        %792 = vmatpush2.xpose.msra.mxu0 0.0
        %793 = vmatprep.subr.mxu0 0.0
        %794 = vmatpush2.xpose.msra.mxu0 0.0
        %795 = vmatprep.subr.mxu0 0.0
        %796 = vmatpush2.xpose.msra.mxu0 0.0
        %797 = vmatprep.subr.mxu0 0.0
        %798 = vmatpush2.xpose.msra.mxu0 0.0
        %799 = vmatprep.subr.mxu0 0.0
        %800 = vmatpush2.xpose.msra.mxu0 0.0
        %801 = vmatprep.subr.mxu0 0.0
        %802 = vmatpush2.xpose.msra.mxu0 0.0
        %803 = vmatprep.subr.mxu0 0.0
        %804 = vmatpush2.xpose.msra.mxu0 0.0
        %805 = vmatprep.subr.mxu0 0.0
        %806 = vmatpush2.xpose.msra.mxu0 0.0
        %807 = vmatprep.subr.mxu0 0.0
        %808 = vmatpush2.xpose.msra.mxu0 0.0
        %809 = vmatprep.subr.mxu0 0.0
        %810 = vmatpush2.xpose.msra.mxu0 0.0
        %811 = vmatprep.subr.mxu0 0.0
        %812 = vmatpush2.xpose.msra.mxu0 0.0
        %813 = vmatprep.subr.mxu0 0.0
        %814 = vmatpush2.xpose.msra.mxu0 0.0
        %815 = vmatprep.subr.mxu0 0.0
        %816 = vmatpush2.xpose.msra.mxu0 0.0
        %817 = vmatprep.subr.mxu0 0.0
        %818 = vmatpush2.xpose.msra.mxu0 0.0
        %819 = vmatprep.mubr.f32.mxu0 0.0
        %820 = vmatmul.mubr.f32.gmra.mxu0 %v750
        %v821 = vpop.f32.mrf.mxu0
        %v822 = vadd.f32 %v589, %v821
        %v823 = vpop.f32.mrf.mxu0
        %824 = vdwg.mxu0
        %826 = vrot.lane.b32.xlu0 %v586, 112
        %v827 = vpop.permute.xlu0 %826
        %v828 = vsel %vm593, %v827, 0
        %v831 = vsel %vm593, %v576, 0
        %833 = vmatprep.subr.mxu0 0.0
        %834 = vmatpush1.xpose.msra.mxu0 0.0
        %835 = vmatprep.subr.mxu0 0.0
        %836 = vmatpush1.xpose.msra.mxu0 0.0
        %837 = vmatprep.subr.mxu0 0.0
        %838 = vmatpush1.xpose.msra.mxu0 0.0
        %839 = vmatprep.subr.mxu0 0.0
        %840 = vmatpush1.xpose.msra.mxu0 0.0
        %841 = vmatprep.subr.mxu0 0.0
        %842 = vmatpush1.xpose.msra.mxu0 0.0
        %843 = vmatprep.subr.mxu0 0.0
        %844 = vmatpush1.xpose.msra.mxu0 0.0
        %845 = vmatprep.subr.mxu0 0.0
        %846 = vmatpush1.xpose.msra.mxu0 0.0
        %847 = vmatprep.subr.mxu0 0.0
        %848 = vmatpush1.xpose.msra.mxu0 0.0
        %849 = vmatprep.subr.mxu0 0.0
        %850 = vmatpush1.xpose.msra.mxu0 0.0
        %851 = vmatprep.subr.mxu0 0.0
        %852 = vmatpush1.xpose.msra.mxu0 0.0
        %853 = vmatprep.subr.mxu0 0.0
        %854 = vmatpush1.xpose.msra.mxu0 0.0
        %855 = vmatprep.subr.mxu0 0.0
        %856 = vmatpush1.xpose.msra.mxu0 0.0
        %857 = vmatprep.subr.mxu0 0.0
        %858 = vmatpush1.xpose.msra.mxu0 0.0
        %859 = vmatprep.subr.mxu0 0.0
        %860 = vmatpush1.xpose.msra.mxu0 0.0
        %861 = vmatprep.subr.mxu0 0.0
        %862 = vmatpush1.xpose.msra.mxu0 0.0
        %863 = vmatprep.subr.mxu0 0.0
        %864 = vmatpush1.xpose.msra.mxu0 %v831
        %865 = vmatprep.subr.mxu0 0.0
        %866 = vmatpush2.xpose.msra.mxu0 0.0
        %867 = vmatprep.subr.mxu0 0.0
        %868 = vmatpush2.xpose.msra.mxu0 0.0
        %869 = vmatprep.subr.mxu0 0.0
        %870 = vmatpush2.xpose.msra.mxu0 0.0
        %871 = vmatprep.subr.mxu0 0.0
        %872 = vmatpush2.xpose.msra.mxu0 0.0
        %873 = vmatprep.subr.mxu0 0.0
        %874 = vmatpush2.xpose.msra.mxu0 0.0
        %875 = vmatprep.subr.mxu0 0.0
        %876 = vmatpush2.xpose.msra.mxu0 0.0
        %877 = vmatprep.subr.mxu0 0.0
        %878 = vmatpush2.xpose.msra.mxu0 0.0
        %879 = vmatprep.subr.mxu0 0.0
        %880 = vmatpush2.xpose.msra.mxu0 0.0
        %881 = vmatprep.subr.mxu0 0.0
        %882 = vmatpush2.xpose.msra.mxu0 0.0
        %883 = vmatprep.subr.mxu0 0.0
        %884 = vmatpush2.xpose.msra.mxu0 0.0
        %885 = vmatprep.subr.mxu0 0.0
        %886 = vmatpush2.xpose.msra.mxu0 0.0
        %887 = vmatprep.subr.mxu0 0.0
        %888 = vmatpush2.xpose.msra.mxu0 0.0
        %889 = vmatprep.subr.mxu0 0.0
        %890 = vmatpush2.xpose.msra.mxu0 0.0
        %891 = vmatprep.subr.mxu0 0.0
        %892 = vmatpush2.xpose.msra.mxu0 0.0
        %893 = vmatprep.subr.mxu0 0.0
        %894 = vmatpush2.xpose.msra.mxu0 0.0
        %895 = vmatprep.subr.mxu0 0.0
        %896 = vmatpush2.xpose.msra.mxu0 0.0
        %897 = vmatprep.mubr.f32.mxu0 0.0
        %898 = vmatmul.mubr.f32.gmra.mxu0 %v828
        %v899 = vpop.f32.mrf.mxu0
        %v900 = vadd.f32 %v589, %v899
        %v901 = vpop.f32.mrf.mxu0
        %902 = vdwg.mxu0
        %v903 = vsel %vm593, %v666, -inf
        %904 = vmax.xlane.f32.xlu0 %v903
        %v905 = vpop.xlane.xlu0 %904
        %v906 = vsel %vm593, %v744, -inf
        %907 = vmax.xlane.f32.xlu0 %v906
        %v908 = vpop.xlane.xlu0 %907
        %v909 = vsel %vm593, %v822, -inf
        %910 = vmax.xlane.f32.xlu0 %v909
        %v911 = vpop.xlane.xlu0 %910
        %v912 = vsel %vm593, %v900, -inf
        %913 = vmax.xlane.f32.xlu0 %v912
        %v914 = vpop.xlane.xlu0 %913
        %v915 = vsub.f32 %v666, %v905
        %v916 = vsub.f32 %v744, %v908
        %v917 = vsub.f32 %v822, %v911
        %v918 = vsub.f32 %v900, %v914
        %v919 = vmul.f32 %v915, 1.442695
        %v920 = vpow.pop %v919
        %v921 = vmul.f32 %v916, 1.442695
        %v922 = vpow.pop %v921
        %v923 = vmul.f32 %v917, 1.442695
        %v924 = vpow.pop %v923
        %v925 = vmul.f32 %v918, 1.442695
        %v926 = vpow.pop %v925
        %v927 = vsel %vm593, %v920, 0.0
        %928 = vadd.xlane.f32.xlu0 %v927
        %v929 = vpop.xlane.xlu0 %928
        %v930 = vsel %vm593, %v922, 0.0
        %931 = vadd.xlane.f32.xlu0 %v930
        %v932 = vpop.xlane.xlu0 %931
        %v933 = vsel %vm593, %v924, 0.0
        %934 = vadd.xlane.f32.xlu0 %v933
        %v935 = vpop.xlane.xlu0 %934
        %v936 = vsel %vm593, %v926, 0.0
        %937 = vadd.xlane.f32.xlu0 %v936
        %v938 = vpop.xlane.xlu0 %937
        %v939 = vrcp.pop %v929
        %v940 = vrcp.pop %v932
        %v941 = vrcp.pop %v935
        %v942 = vrcp.pop %v938
        %v943 = vmul.f32 %v920, %v939
        %v944 = vmul.f32 %v922, %v940
        %v945 = vmul.f32 %v924, %v941
        %v946 = vmul.f32 %v926, %v942
        %948 = vrot.lane.b32.xlu0 %v341, 120
        %v949 = vpop.permute.xlu0 %948
        %v952 = vsel %vm593, %v943, 0
        %954 = vmatprep.subr.mxu0 0.0
        %955 = vmatpush1.msra.mxu0 0.0
        %956 = vmatprep.subr.mxu0 0.0
        %957 = vmatpush1.msra.mxu0 0.0
        %958 = vmatprep.subr.mxu0 0.0
        %959 = vmatpush1.msra.mxu0 0.0
        %960 = vmatprep.subr.mxu0 0.0
        %961 = vmatpush1.msra.mxu0 0.0
        %962 = vmatprep.subr.mxu0 0.0
        %963 = vmatpush1.msra.mxu0 0.0
        %964 = vmatprep.subr.mxu0 0.0
        %965 = vmatpush1.msra.mxu0 0.0
        %966 = vmatprep.subr.mxu0 0.0
        %967 = vmatpush1.msra.mxu0 0.0
        %968 = vmatprep.subr.mxu0 0.0
        %969 = vmatpush1.msra.mxu0 0.0
        %970 = vmatprep.subr.mxu0 0.0
        %971 = vmatpush1.msra.mxu0 0.0
        %972 = vmatprep.subr.mxu0 0.0
        %973 = vmatpush1.msra.mxu0 0.0
        %974 = vmatprep.subr.mxu0 0.0
        %975 = vmatpush1.msra.mxu0 0.0
        %976 = vmatprep.subr.mxu0 0.0
        %977 = vmatpush1.msra.mxu0 0.0
        %978 = vmatprep.subr.mxu0 0.0
        %979 = vmatpush1.msra.mxu0 0.0
        %980 = vmatprep.subr.mxu0 0.0
        %981 = vmatpush1.msra.mxu0 0.0
        %982 = vmatprep.subr.mxu0 0.0
        %983 = vmatpush1.msra.mxu0 0.0
        %984 = vmatprep.subr.mxu0 0.0
        %985 = vmatpush1.msra.mxu0 %v949
        %986 = vmatprep.subr.mxu0 0.0
        %987 = vmatpush2.msra.mxu0 0.0
        %988 = vmatprep.subr.mxu0 0.0
        %989 = vmatpush2.msra.mxu0 0.0
        %990 = vmatprep.subr.mxu0 0.0
        %991 = vmatpush2.msra.mxu0 0.0
        %992 = vmatprep.subr.mxu0 0.0
        %993 = vmatpush2.msra.mxu0 0.0
        %994 = vmatprep.subr.mxu0 0.0
        %995 = vmatpush2.msra.mxu0 0.0
        %996 = vmatprep.subr.mxu0 0.0
        %997 = vmatpush2.msra.mxu0 0.0
        %998 = vmatprep.subr.mxu0 0.0
        %999 = vmatpush2.msra.mxu0 0.0
        %1000 = vmatprep.subr.mxu0 0.0
        %1001 = vmatpush2.msra.mxu0 0.0
        %1002 = vmatprep.subr.mxu0 0.0
        %1003 = vmatpush2.msra.mxu0 0.0
        %1004 = vmatprep.subr.mxu0 0.0
        %1005 = vmatpush2.msra.mxu0 0.0
        %1006 = vmatprep.subr.mxu0 0.0
        %1007 = vmatpush2.msra.mxu0 0.0
        %1008 = vmatprep.subr.mxu0 0.0
        %1009 = vmatpush2.msra.mxu0 0.0
        %1010 = vmatprep.subr.mxu0 0.0
        %1011 = vmatpush2.msra.mxu0 0.0
        %1012 = vmatprep.subr.mxu0 0.0
        %1013 = vmatpush2.msra.mxu0 0.0
        %1014 = vmatprep.subr.mxu0 0.0
        %1015 = vmatpush2.msra.mxu0 0.0
        %1016 = vmatprep.subr.mxu0 0.0
        %1017 = vmatpush2.msra.mxu0 0.0
        %1018 = vmatprep.mubr.f32.mxu0 0.0
        %1019 = vmatmul.mubr.f32.gmra.mxu0 %v952
        %v1020 = vpop.f32.mrf.mxu0
        %v1021 = vadd.f32 0.0, %v1020
        %v1022 = vpop.f32.mrf.mxu0
        %1023 = vdwg.mxu0
        %1025 = vrot.lane.b32.xlu0 %v421, 120
        %v1026 = vpop.permute.xlu0 %1025
        %v1029 = vsel %vm593, %v944, 0
        %1031 = vmatprep.subr.mxu0 0.0
        %1032 = vmatpush1.msra.mxu0 0.0
        %1033 = vmatprep.subr.mxu0 0.0
        %1034 = vmatpush1.msra.mxu0 0.0
        %1035 = vmatprep.subr.mxu0 0.0
        %1036 = vmatpush1.msra.mxu0 0.0
        %1037 = vmatprep.subr.mxu0 0.0
        %1038 = vmatpush1.msra.mxu0 0.0
        %1039 = vmatprep.subr.mxu0 0.0
        %1040 = vmatpush1.msra.mxu0 0.0
        %1041 = vmatprep.subr.mxu0 0.0
        %1042 = vmatpush1.msra.mxu0 0.0
        %1043 = vmatprep.subr.mxu0 0.0
        %1044 = vmatpush1.msra.mxu0 0.0
        %1045 = vmatprep.subr.mxu0 0.0
        %1046 = vmatpush1.msra.mxu0 0.0
        %1047 = vmatprep.subr.mxu0 0.0
        %1048 = vmatpush1.msra.mxu0 0.0
        %1049 = vmatprep.subr.mxu0 0.0
        %1050 = vmatpush1.msra.mxu0 0.0
        %1051 = vmatprep.subr.mxu0 0.0
        %1052 = vmatpush1.msra.mxu0 0.0
        %1053 = vmatprep.subr.mxu0 0.0
        %1054 = vmatpush1.msra.mxu0 0.0
        %1055 = vmatprep.subr.mxu0 0.0
        %1056 = vmatpush1.msra.mxu0 0.0
        %1057 = vmatprep.subr.mxu0 0.0
        %1058 = vmatpush1.msra.mxu0 0.0
        %1059 = vmatprep.subr.mxu0 0.0
        %1060 = vmatpush1.msra.mxu0 0.0
        %1061 = vmatprep.subr.mxu0 0.0
        %1062 = vmatpush1.msra.mxu0 %v1026
        %1063 = vmatprep.subr.mxu0 0.0
        %1064 = vmatpush2.msra.mxu0 0.0
        %1065 = vmatprep.subr.mxu0 0.0
        %1066 = vmatpush2.msra.mxu0 0.0
        %1067 = vmatprep.subr.mxu0 0.0
        %1068 = vmatpush2.msra.mxu0 0.0
        %1069 = vmatprep.subr.mxu0 0.0
        %1070 = vmatpush2.msra.mxu0 0.0
        %1071 = vmatprep.subr.mxu0 0.0
        %1072 = vmatpush2.msra.mxu0 0.0
        %1073 = vmatprep.subr.mxu0 0.0
        %1074 = vmatpush2.msra.mxu0 0.0
        %1075 = vmatprep.subr.mxu0 0.0
        %1076 = vmatpush2.msra.mxu0 0.0
        %1077 = vmatprep.subr.mxu0 0.0
        %1078 = vmatpush2.msra.mxu0 0.0
        %1079 = vmatprep.subr.mxu0 0.0
        %1080 = vmatpush2.msra.mxu0 0.0
        %1081 = vmatprep.subr.mxu0 0.0
        %1082 = vmatpush2.msra.mxu0 0.0
        %1083 = vmatprep.subr.mxu0 0.0
        %1084 = vmatpush2.msra.mxu0 0.0
        %1085 = vmatprep.subr.mxu0 0.0
        %1086 = vmatpush2.msra.mxu0 0.0
        %1087 = vmatprep.subr.mxu0 0.0
        %1088 = vmatpush2.msra.mxu0 0.0
        %1089 = vmatprep.subr.mxu0 0.0
        %1090 = vmatpush2.msra.mxu0 0.0
        %1091 = vmatprep.subr.mxu0 0.0
        %1092 = vmatpush2.msra.mxu0 0.0
        %1093 = vmatprep.subr.mxu0 0.0
        %1094 = vmatpush2.msra.mxu0 0.0
        %1095 = vmatprep.mubr.f32.mxu0 0.0
        %1096 = vmatmul.mubr.f32.gmra.mxu0 %v1029
        %v1097 = vpop.f32.mrf.mxu0
        %v1098 = vadd.f32 0.0, %v1097
        %v1099 = vpop.f32.mrf.mxu0
        %1100 = vdwg.mxu0
        %1102 = vrot.lane.b32.xlu0 %v501, 120
        %v1103 = vpop.permute.xlu0 %1102
        %v1106 = vsel %vm593, %v945, 0
        %1108 = vmatprep.subr.mxu0 0.0
        %1109 = vmatpush1.msra.mxu0 0.0
        %1110 = vmatprep.subr.mxu0 0.0
        %1111 = vmatpush1.msra.mxu0 0.0
        %1112 = vmatprep.subr.mxu0 0.0
        %1113 = vmatpush1.msra.mxu0 0.0
        %1114 = vmatprep.subr.mxu0 0.0
        %1115 = vmatpush1.msra.mxu0 0.0
        %1116 = vmatprep.subr.mxu0 0.0
        %1117 = vmatpush1.msra.mxu0 0.0
        %1118 = vmatprep.subr.mxu0 0.0
        %1119 = vmatpush1.msra.mxu0 0.0
        %1120 = vmatprep.subr.mxu0 0.0
        %1121 = vmatpush1.msra.mxu0 0.0
        %1122 = vmatprep.subr.mxu0 0.0
        %1123 = vmatpush1.msra.mxu0 0.0
        %1124 = vmatprep.subr.mxu0 0.0
        %1125 = vmatpush1.msra.mxu0 0.0
        %1126 = vmatprep.subr.mxu0 0.0
        %1127 = vmatpush1.msra.mxu0 0.0
        %1128 = vmatprep.subr.mxu0 0.0
        %1129 = vmatpush1.msra.mxu0 0.0
        %1130 = vmatprep.subr.mxu0 0.0
        %1131 = vmatpush1.msra.mxu0 0.0
        %1132 = vmatprep.subr.mxu0 0.0
        %1133 = vmatpush1.msra.mxu0 0.0
        %1134 = vmatprep.subr.mxu0 0.0
        %1135 = vmatpush1.msra.mxu0 0.0
        %1136 = vmatprep.subr.mxu0 0.0
        %1137 = vmatpush1.msra.mxu0 0.0
        %1138 = vmatprep.subr.mxu0 0.0
        %1139 = vmatpush1.msra.mxu0 %v1103
        %1140 = vmatprep.subr.mxu0 0.0
        %1141 = vmatpush2.msra.mxu0 0.0
        %1142 = vmatprep.subr.mxu0 0.0
        %1143 = vmatpush2.msra.mxu0 0.0
        %1144 = vmatprep.subr.mxu0 0.0
        %1145 = vmatpush2.msra.mxu0 0.0
        %1146 = vmatprep.subr.mxu0 0.0
        %1147 = vmatpush2.msra.mxu0 0.0
        %1148 = vmatprep.subr.mxu0 0.0
        %1149 = vmatpush2.msra.mxu0 0.0
        %1150 = vmatprep.subr.mxu0 0.0
        %1151 = vmatpush2.msra.mxu0 0.0
        %1152 = vmatprep.subr.mxu0 0.0
        %1153 = vmatpush2.msra.mxu0 0.0
        %1154 = vmatprep.subr.mxu0 0.0
        %1155 = vmatpush2.msra.mxu0 0.0
        %1156 = vmatprep.subr.mxu0 0.0
        %1157 = vmatpush2.msra.mxu0 0.0
        %1158 = vmatprep.subr.mxu0 0.0
        %1159 = vmatpush2.msra.mxu0 0.0
        %1160 = vmatprep.subr.mxu0 0.0
        %1161 = vmatpush2.msra.mxu0 0.0
        %1162 = vmatprep.subr.mxu0 0.0
        %1163 = vmatpush2.msra.mxu0 0.0
        %1164 = vmatprep.subr.mxu0 0.0
        %1165 = vmatpush2.msra.mxu0 0.0
        %1166 = vmatprep.subr.mxu0 0.0
        %1167 = vmatpush2.msra.mxu0 0.0
        %1168 = vmatprep.subr.mxu0 0.0
        %1169 = vmatpush2.msra.mxu0 0.0
        %1170 = vmatprep.subr.mxu0 0.0
        %1171 = vmatpush2.msra.mxu0 0.0
        %1172 = vmatprep.mubr.f32.mxu0 0.0
        %1173 = vmatmul.mubr.f32.gmra.mxu0 %v1106
        %v1174 = vpop.f32.mrf.mxu0
        %v1175 = vadd.f32 0.0, %v1174
        %v1176 = vpop.f32.mrf.mxu0
        %1177 = vdwg.mxu0
        %1179 = vrot.lane.b32.xlu0 %v581, 120
        %v1180 = vpop.permute.xlu0 %1179
        %v1183 = vsel %vm593, %v946, 0
        %1185 = vmatprep.subr.mxu0 0.0
        %1186 = vmatpush1.msra.mxu0 0.0
        %1187 = vmatprep.subr.mxu0 0.0
        %1188 = vmatpush1.msra.mxu0 0.0
        %1189 = vmatprep.subr.mxu0 0.0
        %1190 = vmatpush1.msra.mxu0 0.0
        %1191 = vmatprep.subr.mxu0 0.0
        %1192 = vmatpush1.msra.mxu0 0.0
        %1193 = vmatprep.subr.mxu0 0.0
        %1194 = vmatpush1.msra.mxu0 0.0
        %1195 = vmatprep.subr.mxu0 0.0
        %1196 = vmatpush1.msra.mxu0 0.0
        %1197 = vmatprep.subr.mxu0 0.0
        %1198 = vmatpush1.msra.mxu0 0.0
        %1199 = vmatprep.subr.mxu0 0.0
        %1200 = vmatpush1.msra.mxu0 0.0
        %1201 = vmatprep.subr.mxu0 0.0
        %1202 = vmatpush1.msra.mxu0 0.0
        %1203 = vmatprep.subr.mxu0 0.0
        %1204 = vmatpush1.msra.mxu0 0.0
        %1205 = vmatprep.subr.mxu0 0.0
        %1206 = vmatpush1.msra.mxu0 0.0
        %1207 = vmatprep.subr.mxu0 0.0
        %1208 = vmatpush1.msra.mxu0 0.0
        %1209 = vmatprep.subr.mxu0 0.0
        %1210 = vmatpush1.msra.mxu0 0.0
        %1211 = vmatprep.subr.mxu0 0.0
        %1212 = vmatpush1.msra.mxu0 0.0
        %1213 = vmatprep.subr.mxu0 0.0
        %1214 = vmatpush1.msra.mxu0 0.0
        %1215 = vmatprep.subr.mxu0 0.0
        %1216 = vmatpush1.msra.mxu0 %v1180
        %1217 = vmatprep.subr.mxu0 0.0
        %1218 = vmatpush2.msra.mxu0 0.0
        %1219 = vmatprep.subr.mxu0 0.0
        %1220 = vmatpush2.msra.mxu0 0.0
        %1221 = vmatprep.subr.mxu0 0.0
        %1222 = vmatpush2.msra.mxu0 0.0
        %1223 = vmatprep.subr.mxu0 0.0
        %1224 = vmatpush2.msra.mxu0 0.0
        %1225 = vmatprep.subr.mxu0 0.0
        %1226 = vmatpush2.msra.mxu0 0.0
        %1227 = vmatprep.subr.mxu0 0.0
        %1228 = vmatpush2.msra.mxu0 0.0
        %1229 = vmatprep.subr.mxu0 0.0
        %1230 = vmatpush2.msra.mxu0 0.0
        %1231 = vmatprep.subr.mxu0 0.0
        %1232 = vmatpush2.msra.mxu0 0.0
        %1233 = vmatprep.subr.mxu0 0.0
        %1234 = vmatpush2.msra.mxu0 0.0
        %1235 = vmatprep.subr.mxu0 0.0
        %1236 = vmatpush2.msra.mxu0 0.0
        %1237 = vmatprep.subr.mxu0 0.0
        %1238 = vmatpush2.msra.mxu0 0.0
        %1239 = vmatprep.subr.mxu0 0.0
        %1240 = vmatpush2.msra.mxu0 0.0
        %1241 = vmatprep.subr.mxu0 0.0
        %1242 = vmatpush2.msra.mxu0 0.0
        %1243 = vmatprep.subr.mxu0 0.0
        %1244 = vmatpush2.msra.mxu0 0.0
        %1245 = vmatprep.subr.mxu0 0.0
        %1246 = vmatpush2.msra.mxu0 0.0
        %1247 = vmatprep.subr.mxu0 0.0
        %1248 = vmatpush2.msra.mxu0 0.0
        %1249 = vmatprep.mubr.f32.mxu0 0.0
        %1250 = vmatmul.mubr.f32.gmra.mxu0 %v1183
        %v1251 = vpop.f32.mrf.mxu0
        %v1252 = vadd.f32 0.0, %v1251
        %v1253 = vpop.f32.mrf.mxu0
        %1254 = vdwg.mxu0
        %v1255 = vld [vmem:[%s3] sm:$0xff]
        %v1256 = vld [vmem:[%s3 + $0x8] sm:$0xff]
        %v1257 = vld [vmem:[%s3 + $0x10] sm:$0xff]
        %v1258 = vld [vmem:[%s3 + $0x18] sm:$0xff]
        %v1260 = vsel %vm593, %v1021, 0
        %1262 = vmatprep.subr.mxu0 0.0
        %1263 = vmatpush1.msra.mxu0 0.0
        %1264 = vmatprep.subr.mxu0 0.0
        %1265 = vmatpush1.msra.mxu0 0.0
        %1266 = vmatprep.subr.mxu0 0.0
        %1267 = vmatpush1.msra.mxu0 0.0
        %1268 = vmatprep.subr.mxu0 0.0
        %1269 = vmatpush1.msra.mxu0 0.0
        %1270 = vmatprep.subr.mxu0 0.0
        %1271 = vmatpush1.msra.mxu0 0.0
        %1272 = vmatprep.subr.mxu0 0.0
        %1273 = vmatpush1.msra.mxu0 0.0
        %1274 = vmatprep.subr.mxu0 0.0
        %1275 = vmatpush1.msra.mxu0 0.0
        %1276 = vmatprep.subr.mxu0 0.0
        %1277 = vmatpush1.msra.mxu0 0.0
        %1278 = vmatprep.subr.mxu0 0.0
        %1279 = vmatpush1.msra.mxu0 0.0
        %1280 = vmatprep.subr.mxu0 0.0
        %1281 = vmatpush1.msra.mxu0 0.0
        %1282 = vmatprep.subr.mxu0 0.0
        %1283 = vmatpush1.msra.mxu0 0.0
        %1284 = vmatprep.subr.mxu0 0.0
        %1285 = vmatpush1.msra.mxu0 0.0
        %1286 = vmatprep.subr.mxu0 0.0
        %1287 = vmatpush1.msra.mxu0 0.0
        %1288 = vmatprep.subr.mxu0 0.0
        %1289 = vmatpush1.msra.mxu0 0.0
        %1290 = vmatprep.subr.mxu0 0.0
        %1291 = vmatpush1.msra.mxu0 0.0
        %1292 = vmatprep.subr.mxu0 0.0
        %1293 = vmatpush1.msra.mxu0 %v1255
        %1294 = vmatprep.subr.mxu0 0.0
        %1295 = vmatpush2.msra.mxu0 0.0
        %1296 = vmatprep.subr.mxu0 0.0
        %1297 = vmatpush2.msra.mxu0 0.0
        %1298 = vmatprep.subr.mxu0 0.0
        %1299 = vmatpush2.msra.mxu0 0.0
        %1300 = vmatprep.subr.mxu0 0.0
        %1301 = vmatpush2.msra.mxu0 0.0
        %1302 = vmatprep.subr.mxu0 0.0
        %1303 = vmatpush2.msra.mxu0 0.0
        %1304 = vmatprep.subr.mxu0 0.0
        %1305 = vmatpush2.msra.mxu0 0.0
        %1306 = vmatprep.subr.mxu0 0.0
        %1307 = vmatpush2.msra.mxu0 0.0
        %1308 = vmatprep.subr.mxu0 0.0
        %1309 = vmatpush2.msra.mxu0 0.0
        %1310 = vmatprep.subr.mxu0 0.0
        %1311 = vmatpush2.msra.mxu0 0.0
        %1312 = vmatprep.subr.mxu0 0.0
        %1313 = vmatpush2.msra.mxu0 0.0
        %1314 = vmatprep.subr.mxu0 0.0
        %1315 = vmatpush2.msra.mxu0 0.0
        %1316 = vmatprep.subr.mxu0 0.0
        %1317 = vmatpush2.msra.mxu0 0.0
        %1318 = vmatprep.subr.mxu0 0.0
        %1319 = vmatpush2.msra.mxu0 0.0
        %1320 = vmatprep.subr.mxu0 0.0
        %1321 = vmatpush2.msra.mxu0 0.0
        %1322 = vmatprep.subr.mxu0 0.0
        %1323 = vmatpush2.msra.mxu0 0.0
        %1324 = vmatprep.subr.mxu0 0.0
        %1325 = vmatpush2.msra.mxu0 0.0
        %1326 = vmatprep.mubr.f32.mxu0 0.0
        %1327 = vmatmul.mubr.f32.gmra.mxu0 %v1260
        %v1328 = vpop.f32.mrf.mxu0
        %v1329 = vadd.f32 0.0, %v1328
        %v1330 = vpop.f32.mrf.mxu0
        %1331 = vdwg.mxu0
        %v1333 = vsel %vm593, %v1098, 0
        %1335 = vmatprep.subr.mxu0 0.0
        %1336 = vmatpush1.msra.mxu0 0.0
        %1337 = vmatprep.subr.mxu0 0.0
        %1338 = vmatpush1.msra.mxu0 0.0
        %1339 = vmatprep.subr.mxu0 0.0
        %1340 = vmatpush1.msra.mxu0 0.0
        %1341 = vmatprep.subr.mxu0 0.0
        %1342 = vmatpush1.msra.mxu0 0.0
        %1343 = vmatprep.subr.mxu0 0.0
        %1344 = vmatpush1.msra.mxu0 0.0
        %1345 = vmatprep.subr.mxu0 0.0
        %1346 = vmatpush1.msra.mxu0 0.0
        %1347 = vmatprep.subr.mxu0 0.0
        %1348 = vmatpush1.msra.mxu0 0.0
        %1349 = vmatprep.subr.mxu0 0.0
        %1350 = vmatpush1.msra.mxu0 0.0
        %1351 = vmatprep.subr.mxu0 0.0
        %1352 = vmatpush1.msra.mxu0 0.0
        %1353 = vmatprep.subr.mxu0 0.0
        %1354 = vmatpush1.msra.mxu0 0.0
        %1355 = vmatprep.subr.mxu0 0.0
        %1356 = vmatpush1.msra.mxu0 0.0
        %1357 = vmatprep.subr.mxu0 0.0
        %1358 = vmatpush1.msra.mxu0 0.0
        %1359 = vmatprep.subr.mxu0 0.0
        %1360 = vmatpush1.msra.mxu0 0.0
        %1361 = vmatprep.subr.mxu0 0.0
        %1362 = vmatpush1.msra.mxu0 0.0
        %1363 = vmatprep.subr.mxu0 0.0
        %1364 = vmatpush1.msra.mxu0 0.0
        %1365 = vmatprep.subr.mxu0 0.0
        %1366 = vmatpush1.msra.mxu0 %v1256
        %1367 = vmatprep.subr.mxu0 0.0
        %1368 = vmatpush2.msra.mxu0 0.0
        %1369 = vmatprep.subr.mxu0 0.0
        %1370 = vmatpush2.msra.mxu0 0.0
        %1371 = vmatprep.subr.mxu0 0.0
        %1372 = vmatpush2.msra.mxu0 0.0
        %1373 = vmatprep.subr.mxu0 0.0
        %1374 = vmatpush2.msra.mxu0 0.0
        %1375 = vmatprep.subr.mxu0 0.0
        %1376 = vmatpush2.msra.mxu0 0.0
        %1377 = vmatprep.subr.mxu0 0.0
        %1378 = vmatpush2.msra.mxu0 0.0
        %1379 = vmatprep.subr.mxu0 0.0
        %1380 = vmatpush2.msra.mxu0 0.0
        %1381 = vmatprep.subr.mxu0 0.0
        %1382 = vmatpush2.msra.mxu0 0.0
        %1383 = vmatprep.subr.mxu0 0.0
        %1384 = vmatpush2.msra.mxu0 0.0
        %1385 = vmatprep.subr.mxu0 0.0
        %1386 = vmatpush2.msra.mxu0 0.0
        %1387 = vmatprep.subr.mxu0 0.0
        %1388 = vmatpush2.msra.mxu0 0.0
        %1389 = vmatprep.subr.mxu0 0.0
        %1390 = vmatpush2.msra.mxu0 0.0
        %1391 = vmatprep.subr.mxu0 0.0
        %1392 = vmatpush2.msra.mxu0 0.0
        %1393 = vmatprep.subr.mxu0 0.0
        %1394 = vmatpush2.msra.mxu0 0.0
        %1395 = vmatprep.subr.mxu0 0.0
        %1396 = vmatpush2.msra.mxu0 0.0
        %1397 = vmatprep.subr.mxu0 0.0
        %1398 = vmatpush2.msra.mxu0 0.0
        %1399 = vmatprep.mubr.f32.mxu0 0.0
        %1400 = vmatmul.mubr.f32.gmra.mxu0 %v1333
        %v1401 = vpop.f32.mrf.mxu0
        %v1402 = vadd.f32 0.0, %v1401
        %v1403 = vpop.f32.mrf.mxu0
        %1404 = vdwg.mxu0
        %v1406 = vsel %vm593, %v1175, 0
        %1408 = vmatprep.subr.mxu0 0.0
        %1409 = vmatpush1.msra.mxu0 0.0
        %1410 = vmatprep.subr.mxu0 0.0
        %1411 = vmatpush1.msra.mxu0 0.0
        %1412 = vmatprep.subr.mxu0 0.0
        %1413 = vmatpush1.msra.mxu0 0.0
        %1414 = vmatprep.subr.mxu0 0.0
        %1415 = vmatpush1.msra.mxu0 0.0
        %1416 = vmatprep.subr.mxu0 0.0
        %1417 = vmatpush1.msra.mxu0 0.0
        %1418 = vmatprep.subr.mxu0 0.0
        %1419 = vmatpush1.msra.mxu0 0.0
        %1420 = vmatprep.subr.mxu0 0.0
        %1421 = vmatpush1.msra.mxu0 0.0
        %1422 = vmatprep.subr.mxu0 0.0
        %1423 = vmatpush1.msra.mxu0 0.0
        %1424 = vmatprep.subr.mxu0 0.0
        %1425 = vmatpush1.msra.mxu0 0.0
        %1426 = vmatprep.subr.mxu0 0.0
        %1427 = vmatpush1.msra.mxu0 0.0
        %1428 = vmatprep.subr.mxu0 0.0
        %1429 = vmatpush1.msra.mxu0 0.0
        %1430 = vmatprep.subr.mxu0 0.0
        %1431 = vmatpush1.msra.mxu0 0.0
        %1432 = vmatprep.subr.mxu0 0.0
        %1433 = vmatpush1.msra.mxu0 0.0
        %1434 = vmatprep.subr.mxu0 0.0
        %1435 = vmatpush1.msra.mxu0 0.0
        %1436 = vmatprep.subr.mxu0 0.0
        %1437 = vmatpush1.msra.mxu0 0.0
        %1438 = vmatprep.subr.mxu0 0.0
        %1439 = vmatpush1.msra.mxu0 %v1257
        %1440 = vmatprep.subr.mxu0 0.0
        %1441 = vmatpush2.msra.mxu0 0.0
        %1442 = vmatprep.subr.mxu0 0.0
        %1443 = vmatpush2.msra.mxu0 0.0
        %1444 = vmatprep.subr.mxu0 0.0
        %1445 = vmatpush2.msra.mxu0 0.0
        %1446 = vmatprep.subr.mxu0 0.0
        %1447 = vmatpush2.msra.mxu0 0.0
        %1448 = vmatprep.subr.mxu0 0.0
        %1449 = vmatpush2.msra.mxu0 0.0
        %1450 = vmatprep.subr.mxu0 0.0
        %1451 = vmatpush2.msra.mxu0 0.0
        %1452 = vmatprep.subr.mxu0 0.0
        %1453 = vmatpush2.msra.mxu0 0.0
        %1454 = vmatprep.subr.mxu0 0.0
        %1455 = vmatpush2.msra.mxu0 0.0
        %1456 = vmatprep.subr.mxu0 0.0
        %1457 = vmatpush2.msra.mxu0 0.0
        %1458 = vmatprep.subr.mxu0 0.0
        %1459 = vmatpush2.msra.mxu0 0.0
        %1460 = vmatprep.subr.mxu0 0.0
        %1461 = vmatpush2.msra.mxu0 0.0
        %1462 = vmatprep.subr.mxu0 0.0
        %1463 = vmatpush2.msra.mxu0 0.0
        %1464 = vmatprep.subr.mxu0 0.0
        %1465 = vmatpush2.msra.mxu0 0.0
        %1466 = vmatprep.subr.mxu0 0.0
        %1467 = vmatpush2.msra.mxu0 0.0
        %1468 = vmatprep.subr.mxu0 0.0
        %1469 = vmatpush2.msra.mxu0 0.0
        %1470 = vmatprep.subr.mxu0 0.0
        %1471 = vmatpush2.msra.mxu0 0.0
        %1472 = vmatprep.mubr.f32.mxu0 0.0
        %1473 = vmatmul.mubr.f32.gmra.mxu0 %v1406
        %v1474 = vpop.f32.mrf.mxu0
        %v1475 = vadd.f32 0.0, %v1474
        %v1476 = vpop.f32.mrf.mxu0
        %1477 = vdwg.mxu0
        %v1479 = vsel %vm593, %v1252, 0
        %1481 = vmatprep.subr.mxu0 0.0
        %1482 = vmatpush1.msra.mxu0 0.0
        %1483 = vmatprep.subr.mxu0 0.0
        %1484 = vmatpush1.msra.mxu0 0.0
        %1485 = vmatprep.subr.mxu0 0.0
        %1486 = vmatpush1.msra.mxu0 0.0
        %1487 = vmatprep.subr.mxu0 0.0
        %1488 = vmatpush1.msra.mxu0 0.0
        %1489 = vmatprep.subr.mxu0 0.0
        %1490 = vmatpush1.msra.mxu0 0.0
        %1491 = vmatprep.subr.mxu0 0.0
        %1492 = vmatpush1.msra.mxu0 0.0
        %1493 = vmatprep.subr.mxu0 0.0
        %1494 = vmatpush1.msra.mxu0 0.0
        %1495 = vmatprep.subr.mxu0 0.0
        %1496 = vmatpush1.msra.mxu0 0.0
        %1497 = vmatprep.subr.mxu0 0.0
        %1498 = vmatpush1.msra.mxu0 0.0
        %1499 = vmatprep.subr.mxu0 0.0
        %1500 = vmatpush1.msra.mxu0 0.0
        %1501 = vmatprep.subr.mxu0 0.0
        %1502 = vmatpush1.msra.mxu0 0.0
        %1503 = vmatprep.subr.mxu0 0.0
        %1504 = vmatpush1.msra.mxu0 0.0
        %1505 = vmatprep.subr.mxu0 0.0
        %1506 = vmatpush1.msra.mxu0 0.0
        %1507 = vmatprep.subr.mxu0 0.0
        %1508 = vmatpush1.msra.mxu0 0.0
        %1509 = vmatprep.subr.mxu0 0.0
        %1510 = vmatpush1.msra.mxu0 0.0
        %1511 = vmatprep.subr.mxu0 0.0
        %1512 = vmatpush1.msra.mxu0 %v1258
        %1513 = vmatprep.subr.mxu0 0.0
        %1514 = vmatpush2.msra.mxu0 0.0
        %1515 = vmatprep.subr.mxu0 0.0
        %1516 = vmatpush2.msra.mxu0 0.0
        %1517 = vmatprep.subr.mxu0 0.0
        %1518 = vmatpush2.msra.mxu0 0.0
        %1519 = vmatprep.subr.mxu0 0.0
        %1520 = vmatpush2.msra.mxu0 0.0
        %1521 = vmatprep.subr.mxu0 0.0
        %1522 = vmatpush2.msra.mxu0 0.0
        %1523 = vmatprep.subr.mxu0 0.0
        %1524 = vmatpush2.msra.mxu0 0.0
        %1525 = vmatprep.subr.mxu0 0.0
        %1526 = vmatpush2.msra.mxu0 0.0
        %1527 = vmatprep.subr.mxu0 0.0
        %1528 = vmatpush2.msra.mxu0 0.0
        %1529 = vmatprep.subr.mxu0 0.0
        %1530 = vmatpush2.msra.mxu0 0.0
        %1531 = vmatprep.subr.mxu0 0.0
        %1532 = vmatpush2.msra.mxu0 0.0
        %1533 = vmatprep.subr.mxu0 0.0
        %1534 = vmatpush2.msra.mxu0 0.0
        %1535 = vmatprep.subr.mxu0 0.0
        %1536 = vmatpush2.msra.mxu0 0.0
        %1537 = vmatprep.subr.mxu0 0.0
        %1538 = vmatpush2.msra.mxu0 0.0
        %1539 = vmatprep.subr.mxu0 0.0
        %1540 = vmatpush2.msra.mxu0 0.0
        %1541 = vmatprep.subr.mxu0 0.0
        %1542 = vmatpush2.msra.mxu0 0.0
        %1543 = vmatprep.subr.mxu0 0.0
        %1544 = vmatpush2.msra.mxu0 0.0
        %1545 = vmatprep.mubr.f32.mxu0 0.0
        %1546 = vmatmul.mubr.f32.gmra.mxu0 %v1479
        %v1547 = vpop.f32.mrf.mxu0
        %v1548 = vadd.f32 0.0, %v1547
        %v1549 = vpop.f32.mrf.mxu0
        %1550 = vdwg.mxu0
        %v1551 = vsel %vm259, %v1329, 0.0
        %v1552 = vsel %vm259, %v1402, 0.0
        %v1553 = vadd.f32 %v1551, %v1552
        %v1554 = vsel %vm259, %v1475, 0.0
        %v1555 = vadd.f32 %v1553, %v1554
        %v1556 = vsel %vm259, %v1548, 0.0
        %v1557 = vadd.f32 %v1555, %v1556
        %v1558 = vld [vmem:[%s4] sm:$0x1]
        %v1560 = vlaneseq
        %v1561 = vshrl.u32 %v1560, 7
        %v1562 = vsub.s32 0, %v1561
        %v1563 = vrot.slane %v1558, %v1562
        %v1565 = vadd.f32 %v1557, %v1563
        %1566 = vst.msk [vmem:[%s230] sm:$0xff] %vm259, %v1565
        %s1567 = sand.u32 %s142, 1
        %s1568 = scalar_lea.sflag [#allocation3], %s1567
        %s1569 = sand.u32 %s142, 1
        %s1570 = smul.addr %s1569, 8
        %s1571 = scalar_lea.vmem [#allocation2], %s1570
        // Predicated region
        $region41: #{tpu_custom_call.1} parent=39 // pred_check
          %p1572 = pneg %p152
        $region42: #{tpu_custom_call.1} parent=39 // pred_check_branch
          %1574 = sbr.rel (%p1572) target = $region44
        $region43: #{tpu_custom_call.1} parent=39 // pred_region
          %s1576 = ssub.s32 128, 128
          %1577 = vsyncadd %s1568, %s1576
          %s1578 = smul.addr %s19, 128
          %s1579 = scalar_lea.hbm %s5, %s1578
          %s1581 = sshll.u32 %s1571, 4
          %s1582 = int_to_ptr.vmem [resolvable:$true] %s1581
          %1584 = dma.vmem_to_hbm [thread:$0]  %s1582, 128, %s1579, %s1568
        $region44: #{tpu_custom_call.1} parent=39 // pred_fallthru
          _
      $region40: #{tpu_custom_call.1} parent=5 // pred_fallthru
        _
      %p1585 = scmp.le.s32.totalorder 2, %s14
      // Predicated region
      $region45: #{tpu_custom_call.1} parent=5 // pred_check
        %p1586 = pneg %p1585
      $region46: #{tpu_custom_call.1} parent=5 // pred_check_branch
        %1588 = sbr.rel (%p1586) target = $region48
      $region47: #{tpu_custom_call.1} parent=5 // pred_region
        %s1589 = ssub.s32 %s14, 2
        // Predicated region
        $region49: #{tpu_custom_call.1} parent=47 // pred_check
          %p1590 = pneg %p158
        $region50: #{tpu_custom_call.1} parent=47 // pred_check_branch
          %1592 = sbr.rel (%p1590) target = $region52
        $region51: #{tpu_custom_call.1} parent=47 // pred_region
          %s1593 = sand.u32 %s143, 1
          %s1594 = scalar_lea.sflag [#allocation3], %s1593
          %s1595 = sand.u32 %s143, 1
          %s1596 = smul.addr %s1595, 8
          %s1597 = scalar_lea.vmem [#allocation2], %s1596
          %1598 = dma.done %s1594, 128
        $region52: #{tpu_custom_call.1} parent=47 // pred_fallthru
          _
      $region48: #{tpu_custom_call.1} parent=5 // pred_fallthru
        _
    $region6: #{tpu_custom_call.1} parent=1 // loop_footer
      %s18 = sadd.s32 1, %s14
    $region7: #{tpu_custom_call.1} parent=1 // loop_footer_branch
      %13 = sbr.rel target = $region3
    $region8: #{tpu_custom_call.1} parent=1 // loop_exit
      _
    %1599 = vsyncpa [#allocation3], 1
    %s1600 = scalar_lea.sflag [#allocation3], 1
    %1601 = vsyncpa %s1600, 1

</llo_original>
